<compile_context>
chip_gen: v7x
topology: tpu7x:2x2x1
jax: 0.10.0
libtpu: 0.0.40
codegen_flags: <defaults>
</compile_context>

<pallas_src>
import functools
import math

import jax
import jax.numpy as jnp
from jax.experimental import pallas as pl
from jax.experimental.pallas import tpu as pltpu

IN_F, H1, H2, OUT_F = 8, 64, 32, 1
PACK = 16                      # samples packed per 128-lane row (K = 16*8 = 128)
HALF = PACK // 2               # 8-sample half-groups used for fc2/fc3
MIN_TILE = PACK * 8            # minimum batch tile (128 rows -> 8 packed sublanes)


def _mlp_kernel(x_ref, w1a_ref, w1b_ref, b1_ref, w2_ref, b2_ref,
                w3a_ref, w3b_ref, b3_ref, o_ref):
    # x tile: (tmp, 128) f32 -> bf16 for single-pass MXU, accumulate in f32.
    xb = x_ref[...].astype(jnp.bfloat16)

    # fc1 + relu, split into the two 8-sample half-groups (samples 0..7 / 8..15 of
    # each packed row).  Each dot: (tmp,128) @ (128,512) -> (tmp,512).
    h1a = jnp.dot(xb, w1a_ref[...], preferred_element_type=jnp.float32) + b1_ref[...]
    h1b = jnp.dot(xb, w1b_ref[...], preferred_element_type=jnp.float32) + b1_ref[...]
    h1a = jnp.maximum(h1a, 0.0).astype(jnp.bfloat16)
    h1b = jnp.maximum(h1b, 0.0).astype(jnp.bfloat16)

    # fc2 + relu, shared block-diagonal (512,256) weight per half-group.
    h2a = jnp.dot(h1a, w2_ref[...], preferred_element_type=jnp.float32) + b2_ref[...]
    h2b = jnp.dot(h1b, w2_ref[...], preferred_element_type=jnp.float32) + b2_ref[...]
    h2a = jnp.maximum(h2a, 0.0).astype(jnp.bfloat16)
    h2b = jnp.maximum(h2b, 0.0).astype(jnp.bfloat16)

    # fc3 + sigmoid.  w3a writes output lanes 0..7, w3b lanes 8..15 (zero-padded
    # columns), so a simple add reassembles the 16-wide packed output row.
    z = (jnp.dot(h2a, w3a_ref[...], preferred_element_type=jnp.float32)
         + jnp.dot(h2b, w3b_ref[...], preferred_element_type=jnp.float32)
         + b3_ref[...])
    # sigmoid(z) = 1 / (1 + exp(-z)); approx reciprocal lands in the EUP slot.
    o_ref[...] = pl.reciprocal(1.0 + jnp.exp(-z), approx=True).astype(o_ref.dtype)


def init_params(key):
    """Deterministic init mirroring nn.Linear default (uniform +-1/sqrt(fan_in))."""
    def linear(key, fan_in, fan_out):
        kw, kb = jax.random.split(key)
        bound = 1.0 / math.sqrt(fan_in)
        # stored already transposed: (in, out)
        w = jax.random.uniform(kw, (fan_in, fan_out), jnp.float32, -bound, bound)
        b = jax.random.uniform(kb, (1, fan_out), jnp.float32, -bound, bound)
        return w, b

    k1, k2, k3 = jax.random.split(key, 3)
    w1, b1 = linear(k1, IN_F, H1)
    w2, b2 = linear(k2, H1, H2)
    w3, b3 = linear(k3, H2, OUT_F)
    return {"w1": w1, "b1": b1, "w2": w2, "b2": b2, "w3": w3, "b3": b3}


def pack_params(params):
    """Block-diagonal packing (done ONCE at init time), weights stored in bf16.

    fc1 is split by output half-group so that fc2/fc3 never see the all-zero
    cross-group blocks:
      w1a/w1b: (128, 512)  b1: (1, 512)
      w2     : (512, 256)  b2: (1, 256)     (shared by both half-groups)
      w3a/w3b: (256, 16)   b3: (1, 16)      (w3a -> lanes 0..7, w3b -> lanes 8..15)
    """
    eye_p = jnp.eye(PACK, dtype=jnp.float32)
    eye_h = jnp.eye(HALF, dtype=jnp.float32)
    w1_bd = jnp.kron(eye_p, params["w1"])                    # (128, 1024)
    w3_h = jnp.kron(eye_h, params["w3"])                     # (256, 8)
    zeros_h = jnp.zeros_like(w3_h)
    return {
        "w1a": w1_bd[:, : HALF * H1].astype(jnp.bfloat16),   # (128, 512)
        "w1b": w1_bd[:, HALF * H1:].astype(jnp.bfloat16),    # (128, 512)
        "b1": jnp.tile(params["b1"], (1, HALF)),             # (1, 512) f32
        "w2": jnp.kron(eye_h, params["w2"]).astype(jnp.bfloat16),   # (512, 256)
        "b2": jnp.tile(params["b2"], (1, HALF)),             # (1, 256) f32
        "w3a": jnp.concatenate([w3_h, zeros_h], axis=1).astype(jnp.bfloat16),  # (256,16)
        "w3b": jnp.concatenate([zeros_h, w3_h], axis=1).astype(jnp.bfloat16),  # (256,16)
        "b3": jnp.tile(params["b3"], (1, PACK)),             # (1, 16) f32
    }


def _round_up(n, m):
    return ((n + m - 1) // m) * m


@functools.partial(jax.jit, static_argnames=("max_tile_rows",))
def salary_predictor_forward(x, packed, max_tile_rows=8192):
    """x: (B, 8) float32.  packed: dict from pack_params().  Returns (B, 1) f32."""
    B, F = x.shape
    # Pick the batch tile: large (default 8192 rows -> tmp=512 packed rows) to
    # amortize per-step overhead, but no larger than ~half the padded batch so the
    # grid has >=2 steps (lets v7x split the "parallel" axis across its 2 TCs).
    bp_min = _round_up(B, MIN_TILE)
    tile_rows = min(max_tile_rows, _round_up(max(bp_min // 2, MIN_TILE), MIN_TILE))
    Bp = _round_up(B, tile_rows)
    if Bp != B:
        x = jnp.pad(x, ((0, Bp - B), (0, 0)))
    xp = x.reshape(Bp // PACK, PACK * F)        # (Bp/16, 128), free row-major reshape
    tmp = tile_rows // PACK                     # packed rows per tile (multiple of 8)
    grid = (Bp // tile_rows,)

    const = lambda i: (0, 0)                    # weights/biases: VMEM-resident
    out_packed = pl.pallas_call(
        _mlp_kernel,
        out_shape=jax.ShapeDtypeStruct((Bp // PACK, PACK), jnp.float32),
        grid=grid,
        in_specs=[
            pl.BlockSpec((tmp, PACK * F), lambda i: (i, 0)),   # x tiles stream
            pl.BlockSpec(packed["w1a"].shape, const),
            pl.BlockSpec(packed["w1b"].shape, const),
            pl.BlockSpec(packed["b1"].shape, const),
            pl.BlockSpec(packed["w2"].shape, const),
            pl.BlockSpec(packed["b2"].shape, const),
            pl.BlockSpec(packed["w3a"].shape, const),
            pl.BlockSpec(packed["w3b"].shape, const),
            pl.BlockSpec(packed["b3"].shape, const),
        ],
        out_specs=pl.BlockSpec((tmp, PACK), lambda i: (i, 0)),  # 16-lane packed out
        compiler_params=pltpu.CompilerParams(
            dimension_semantics=("parallel",),   # shard batch tiles across TCs (v7x)
        ),
    )(xp, packed["w1a"], packed["w1b"], packed["b1"], packed["w2"],
      packed["b2"], packed["w3a"], packed["w3b"], packed["b3"])

    return out_packed.reshape(Bp, 1)[:B]


def _reference(x, params):
    h1 = jnp.maximum(x @ params["w1"] + params["b1"], 0.0)
    h2 = jnp.maximum(h1 @ params["w2"] + params["b2"], 0.0)
    return jax.nn.sigmoid(h2 @ params["w3"] + params["b3"])


if __name__ == "__main__":
    key = jax.random.PRNGKey(0)
    kp, kx, kx2 = jax.random.split(key, 3)
    params = init_params(kp)
    packed = pack_params(params)

    # Small-batch check (single 128-row tile).
    B = 16
    x = jax.random.normal(kx, (B, IN_F), jnp.float32)
    out = jax.block_until_ready(salary_predictor_forward(x, packed))
    ref = _reference(x, params)
    assert out.shape == (B, 1)
    # bf16 weights/activations on the MXU -> loosened tolerance vs. f32 reference.
    assert jnp.allclose(out, ref, atol=2e-2, rtol=0.0)

    # Larger batch: exercises the multi-tile grid (2 steps) + batch-padding path.
    B2 = 2500
    x2 = jax.random.normal(kx2, (B2, IN_F), jnp.float32)
    out2 = jax.block_until_ready(salary_predictor_forward(x2, packed))
    ref2 = _reference(x2, params)
    assert out2.shape == (B2, 1)
    assert jnp.allclose(out2, ref2, atol=2e-2, rtol=0.0)

    print("KERNEL_OK")
</pallas_src>

<mosaic_0001>
module attributes {stable_mosaic.version = 11 : i64} {
  func.func @_mlp_kernel(%arg0: i32, %arg1: memref<8x128xf32, #tpu.memory_space<vmem>>, %arg2: memref<128x512xbf16, #tpu.memory_space<vmem>>, %arg3: memref<128x512xbf16, #tpu.memory_space<vmem>>, %arg4: memref<1x512xf32, #tpu.memory_space<vmem>>, %arg5: memref<512x256xbf16, #tpu.memory_space<vmem>>, %arg6: memref<1x256xf32, #tpu.memory_space<vmem>>, %arg7: memref<256x16xbf16, #tpu.memory_space<vmem>>, %arg8: memref<256x16xbf16, #tpu.memory_space<vmem>>, %arg9: memref<1x16xf32, #tpu.memory_space<vmem>>, %arg10: memref<8x16xf32, #tpu.memory_space<vmem>>) attributes {dimension_semantics = [#tpu.dimension_semantics<parallel>], iteration_bounds = array<i64: 1>, scalar_prefetch = 0 : i64, scratch_operands = 0 : i64, tpu.core_type = #tpu.core_type<tc>, window_params = [{transform_indices = @transform_0, window_bounds = array<i64: 8, 128>}, {pipeline_mode = #tpu.pipeline_mode<synchronous>, transform_indices = @transform_1, window_bounds = array<i64: 128, 512>}, {pipeline_mode = #tpu.pipeline_mode<synchronous>, transform_indices = @transform_2, window_bounds = array<i64: 128, 512>}, {pipeline_mode = #tpu.pipeline_mode<synchronous>, transform_indices = @transform_3, window_bounds = array<i64: 1, 512>}, {pipeline_mode = #tpu.pipeline_mode<synchronous>, transform_indices = @transform_4, window_bounds = array<i64: 512, 256>}, {pipeline_mode = #tpu.pipeline_mode<synchronous>, transform_indices = @transform_5, window_bounds = array<i64: 1, 256>}, {pipeline_mode = #tpu.pipeline_mode<synchronous>, transform_indices = @transform_6, window_bounds = array<i64: 256, 16>}, {pipeline_mode = #tpu.pipeline_mode<synchronous>, transform_indices = @transform_7, window_bounds = array<i64: 256, 16>}, {pipeline_mode = #tpu.pipeline_mode<synchronous>, transform_indices = @transform_8, window_bounds = array<i64: 1, 16>}, {transform_indices = @transform_9, window_bounds = array<i64: 8, 16>}]} {
    %c0 = arith.constant 0 : index
    %c0_0 = arith.constant 0 : index
    %0 = vector.load %arg1[%c0, %c0_0] : memref<8x128xf32, #tpu.memory_space<vmem>>, vector<8x128xf32>
    %1 = arith.truncf %0 : vector<8x128xf32> to vector<8x128xbf16>
    %c0_1 = arith.constant 0 : index
    %c0_2 = arith.constant 0 : index
    %2 = vector.load %arg2[%c0_1, %c0_2] : memref<128x512xbf16, #tpu.memory_space<vmem>>, vector<128x512xbf16>
    %cst = arith.constant dense<0.000000e+00> : vector<8x512xf32>
    %3 = tpu.matmul %1, %2, %cst {dimension_numbers = #tpu.dot_dimension_numbers<[1], [0], [0], [1], [0, 0, 1, 1], [], []>} : vector<8x128xbf16>, vector<128x512xbf16>, vector<8x512xf32> -> vector<8x512xf32>
    %c0_3 = arith.constant 0 : index
    %c0_4 = arith.constant 0 : index
    %4 = vector.load %arg4[%c0_3, %c0_4] : memref<1x512xf32, #tpu.memory_space<vmem>>, vector<1x512xf32>
    %5 = vector.broadcast %4 : vector<1x512xf32> to vector<8x512xf32>
    %6 = arith.addf %3, %5 : vector<8x512xf32>
    %c0_5 = arith.constant 0 : index
    %c0_6 = arith.constant 0 : index
    %7 = vector.load %arg3[%c0_5, %c0_6] : memref<128x512xbf16, #tpu.memory_space<vmem>>, vector<128x512xbf16>
    %cst_7 = arith.constant dense<0.000000e+00> : vector<8x512xf32>
    %8 = tpu.matmul %1, %7, %cst_7 {dimension_numbers = #tpu.dot_dimension_numbers<[1], [0], [0], [1], [0, 0, 1, 1], [], []>} : vector<8x128xbf16>, vector<128x512xbf16>, vector<8x512xf32> -> vector<8x512xf32>
    %c0_8 = arith.constant 0 : index
    %c0_9 = arith.constant 0 : index
    %9 = vector.load %arg4[%c0_8, %c0_9] : memref<1x512xf32, #tpu.memory_space<vmem>>, vector<1x512xf32>
    %10 = vector.broadcast %9 : vector<1x512xf32> to vector<8x512xf32>
    %11 = arith.addf %8, %10 : vector<8x512xf32>
    %cst_10 = arith.constant 0.000000e+00 : f32
    %12 = vector.broadcast %cst_10 : f32 to vector<8x512xf32>
    %13 = arith.maximumf %6, %12 : vector<8x512xf32>
    %14 = arith.truncf %13 : vector<8x512xf32> to vector<8x512xbf16>
    %cst_11 = arith.constant 0.000000e+00 : f32
    %15 = vector.broadcast %cst_11 : f32 to vector<8x512xf32>
    %16 = arith.maximumf %11, %15 : vector<8x512xf32>
    %17 = arith.truncf %16 : vector<8x512xf32> to vector<8x512xbf16>
    %c0_12 = arith.constant 0 : index
    %c0_13 = arith.constant 0 : index
    %18 = vector.load %arg5[%c0_12, %c0_13] : memref<512x256xbf16, #tpu.memory_space<vmem>>, vector<512x256xbf16>
    %cst_14 = arith.constant dense<0.000000e+00> : vector<8x256xf32>
    %19 = tpu.matmul %14, %18, %cst_14 {dimension_numbers = #tpu.dot_dimension_numbers<[1], [0], [0], [1], [0, 0, 1, 1], [], []>} : vector<8x512xbf16>, vector<512x256xbf16>, vector<8x256xf32> -> vector<8x256xf32>
    %c0_15 = arith.constant 0 : index
    %c0_16 = arith.constant 0 : index
    %20 = vector.load %arg6[%c0_15, %c0_16] : memref<1x256xf32, #tpu.memory_space<vmem>>, vector<1x256xf32>
    %21 = vector.broadcast %20 : vector<1x256xf32> to vector<8x256xf32>
    %22 = arith.addf %19, %21 : vector<8x256xf32>
    %c0_17 = arith.constant 0 : index
    %c0_18 = arith.constant 0 : index
    %23 = vector.load %arg5[%c0_17, %c0_18] : memref<512x256xbf16, #tpu.memory_space<vmem>>, vector<512x256xbf16>
    %cst_19 = arith.constant dense<0.000000e+00> : vector<8x256xf32>
    %24 = tpu.matmul %17, %23, %cst_19 {dimension_numbers = #tpu.dot_dimension_numbers<[1], [0], [0], [1], [0, 0, 1, 1], [], []>} : vector<8x512xbf16>, vector<512x256xbf16>, vector<8x256xf32> -> vector<8x256xf32>
    %c0_20 = arith.constant 0 : index
    %c0_21 = arith.constant 0 : index
    %25 = vector.load %arg6[%c0_20, %c0_21] : memref<1x256xf32, #tpu.memory_space<vmem>>, vector<1x256xf32>
    %26 = vector.broadcast %25 : vector<1x256xf32> to vector<8x256xf32>
    %27 = arith.addf %24, %26 : vector<8x256xf32>
    %cst_22 = arith.constant 0.000000e+00 : f32
    %28 = vector.broadcast %cst_22 : f32 to vector<8x256xf32>
    %29 = arith.maximumf %22, %28 : vector<8x256xf32>
    %30 = arith.truncf %29 : vector<8x256xf32> to vector<8x256xbf16>
    %cst_23 = arith.constant 0.000000e+00 : f32
    %31 = vector.broadcast %cst_23 : f32 to vector<8x256xf32>
    %32 = arith.maximumf %27, %31 : vector<8x256xf32>
    %33 = arith.truncf %32 : vector<8x256xf32> to vector<8x256xbf16>
    %c0_24 = arith.constant 0 : index
    %c0_25 = arith.constant 0 : index
    %34 = vector.load %arg7[%c0_24, %c0_25] : memref<256x16xbf16, #tpu.memory_space<vmem>>, vector<256x16xbf16>
    %cst_26 = arith.constant dense<0.000000e+00> : vector<8x16xf32>
    %35 = tpu.matmul %30, %34, %cst_26 {dimension_numbers = #tpu.dot_dimension_numbers<[1], [0], [0], [1], [0, 0, 1, 1], [], []>} : vector<8x256xbf16>, vector<256x16xbf16>, vector<8x16xf32> -> vector<8x16xf32>
    %c0_27 = arith.constant 0 : index
    %c0_28 = arith.constant 0 : index
    %36 = vector.load %arg8[%c0_27, %c0_28] : memref<256x16xbf16, #tpu.memory_space<vmem>>, vector<256x16xbf16>
    %cst_29 = arith.constant dense<0.000000e+00> : vector<8x16xf32>
    %37 = tpu.matmul %33, %36, %cst_29 {dimension_numbers = #tpu.dot_dimension_numbers<[1], [0], [0], [1], [0, 0, 1, 1], [], []>} : vector<8x256xbf16>, vector<256x16xbf16>, vector<8x16xf32> -> vector<8x16xf32>
    %38 = arith.addf %35, %37 : vector<8x16xf32>
    %c0_30 = arith.constant 0 : index
    %c0_31 = arith.constant 0 : index
    %39 = vector.load %arg9[%c0_30, %c0_31] : memref<1x16xf32, #tpu.memory_space<vmem>>, vector<1x16xf32>
    %40 = vector.broadcast %39 : vector<1x16xf32> to vector<8x16xf32>
    %41 = arith.addf %38, %40 : vector<8x16xf32>
    %cst_32 = arith.constant 0.000000e+00 : f32
    %42 = vector.broadcast %cst_32 : f32 to vector<8x16xf32>
    %43 = arith.subf %42, %41 : vector<8x16xf32>
    %44 = math.exp %43 : vector<8x16xf32>
    %cst_33 = arith.constant 1.000000e+00 : f32
    %45 = vector.broadcast %cst_33 : f32 to vector<8x16xf32>
    %46 = arith.addf %45, %44 : vector<8x16xf32>
    %47 = tpu.reciprocal %46 {approx = true} : vector<8x16xf32> -> vector<8x16xf32>
    %c0_34 = arith.constant 0 : index
    %c0_35 = arith.constant 0 : index
    %48 = vector.load %arg10[%c0_34, %c0_35] : memref<8x16xf32, #tpu.memory_space<vmem>>, vector<8x16xf32>
    tpu.vector_store %arg10[%c0_34, %c0_35], %47 {strides = array<i32>} : memref<8x16xf32, #tpu.memory_space<vmem>>, vector<8x16xf32>,
    return
  }
  func.func @transform_0(%arg0: i32) -> (i32, i32) {
    %c0_i32 = arith.constant 0 : i32
    %c0_i32_0 = arith.constant 0 : i32
    return %arg0, %c0_i32 : i32, i32
  }
  func.func @transform_1(%arg0: i32) -> (i32, i32) {
    %c0_i32 = arith.constant 0 : i32
    %c0_i32_0 = arith.constant 0 : i32
    %c0_i32_1 = arith.constant 0 : i32
    return %c0_i32, %c0_i32_0 : i32, i32
  }
  func.func @transform_2(%arg0: i32) -> (i32, i32) {
    %c0_i32 = arith.constant 0 : i32
    %c0_i32_0 = arith.constant 0 : i32
    %c0_i32_1 = arith.constant 0 : i32
    return %c0_i32, %c0_i32_0 : i32, i32
  }
  func.func @transform_3(%arg0: i32) -> (i32, i32) {
    %c0_i32 = arith.constant 0 : i32
    %c0_i32_0 = arith.constant 0 : i32
    %c0_i32_1 = arith.constant 0 : i32
    return %c0_i32, %c0_i32_0 : i32, i32
  }
  func.func @transform_4(%arg0: i32) -> (i32, i32) {
    %c0_i32 = arith.constant 0 : i32
    %c0_i32_0 = arith.constant 0 : i32
    %c0_i32_1 = arith.constant 0 : i32
    return %c0_i32, %c0_i32_0 : i32, i32
  }
  func.func @transform_5(%arg0: i32) -> (i32, i32) {
    %c0_i32 = arith.constant 0 : i32
    %c0_i32_0 = arith.constant 0 : i32
    %c0_i32_1 = arith.constant 0 : i32
    return %c0_i32, %c0_i32_0 : i32, i32
  }
  func.func @transform_6(%arg0: i32) -> (i32, i32) {
    %c0_i32 = arith.constant 0 : i32
    %c0_i32_0 = arith.constant 0 : i32
    %c0_i32_1 = arith.constant 0 : i32
    return %c0_i32, %c0_i32_0 : i32, i32
  }
  func.func @transform_7(%arg0: i32) -> (i32, i32) {
    %c0_i32 = arith.constant 0 : i32
    %c0_i32_0 = arith.constant 0 : i32
    %c0_i32_1 = arith.constant 0 : i32
    return %c0_i32, %c0_i32_0 : i32, i32
  }
  func.func @transform_8(%arg0: i32) -> (i32, i32) {
    %c0_i32 = arith.constant 0 : i32
    %c0_i32_0 = arith.constant 0 : i32
    %c0_i32_1 = arith.constant 0 : i32
    return %c0_i32, %c0_i32_0 : i32, i32
  }
  func.func @transform_9(%arg0: i32) -> (i32, i32) {
    %c0_i32 = arith.constant 0 : i32
    %c0_i32_0 = arith.constant 0 : i32
    return %arg0, %c0_i32 : i32, i32
  }
}

</mosaic_0001>

<llo_original>
// kernel: salary_predictor_forward.1
$region0: #{salary_predictor_forward.1}
  #allocation0 [shape = 'u32[]', space=smem, size = 0x4, offset = 0x4, fixed_abs, tag = 'smem constant byte address 0x4 - core index']
  #allocation1 [shape = 'u32[144,128]{1,0:T(1,128)}', space=vmem, size = 0x12000, scoped, tag = 'internal scratch']
  %s0 = inlined_call_operand.vmem [shape: f32[8,128], index: 0, kind: input, shape index: {}]
  %s1 = inlined_call_operand.hbm [shape: bf16[128,512], index: 1, kind: input, shape index: {}]
  %s2 = inlined_call_operand.hbm [shape: bf16[128,512], index: 2, kind: input, shape index: {}]
  %s3 = inlined_call_operand.vmem [shape: f32[1,512], index: 3, kind: input, shape index: {}]
  %s4 = inlined_call_operand.vmem [shape: bf16[512,256], index: 4, kind: input, shape index: {}]
  %s5 = inlined_call_operand.vmem [shape: f32[1,256], index: 5, kind: input, shape index: {}]
  %s6 = inlined_call_operand.vmem [shape: bf16[256,16], index: 6, kind: input, shape index: {}]
  %s7 = inlined_call_operand.vmem [shape: bf16[256,16], index: 7, kind: input, shape index: {}]
  %s8 = inlined_call_operand.vmem [shape: f32[1,16], index: 8, kind: input, shape index: {}]
  %s9 = inlined_call_operand.vmem [shape: f32[8,16], index: 9, kind: output, shape index: {}]
  %s10 = sld [smem:[#allocation0]]
  $region54: #{salary_predictor_forward.1} parent=0
    _
  %s12 = ssub.s32 1, %s10
  %s13 = scalar_select 0, %s12, %s10
  $region1: #{salary_predictor_forward.1} parent=0
    #allocation2 [shape = 'u8[131072]{0}', space=vmem, size = 0x20000, scoped, tag = 'input window, operand 1, single buffered']
    #allocation3 [shape = 's32[1]{0}', space=sflag, size = 0x4, scoped, tag = 'scoped memory for salary_predictor_forward.1']
    #allocation4 [shape = 'u8[131072]{0}', space=vmem, size = 0x20000, scoped, tag = 'input window, operand 2, single buffered']
    #allocation5 [shape = 's32[1]{0}', space=sflag, size = 0x4, scoped, tag = 'scoped memory for salary_predictor_forward.1']
    %14 = vsyncpa [#allocation3], 0
    %15 = vsyncpa [#allocation5], 0
    // Predicated region
    $region2: #{salary_predictor_forward.1} parent=1 // pred_check
      _
    $region3: #{salary_predictor_forward.1} parent=1 // pred_check_branch
      %17 = sbr.rel (0) target = $region5
    $region4: #{salary_predictor_forward.1} parent=1 // pred_region
      _
    $region5: #{salary_predictor_forward.1} parent=1 // pred_fallthru
      _
    // Predicated region
    $region6: #{salary_predictor_forward.1} parent=1 // pred_check
      _
    $region7: #{salary_predictor_forward.1} parent=1 // pred_check_branch
      %19 = sbr.rel (0) target = $region9
    $region8: #{salary_predictor_forward.1} parent=1 // pred_region
      %s21 = ssub.s32 4096, 4096
      %22 = vsyncadd [#allocation3], %s21
      %s23 = sshll.u32 [#allocation2], 4
      %s24 = int_to_ptr.vmem [resolvable:$true] %s23
      %29 = dma.hbm_to_vmem [thread:$0]  %s1, 4096, %s24, [#allocation3], 256, 256, 16
    $region9: #{salary_predictor_forward.1} parent=1 // pred_fallthru
      _
    // Predicated region
    $region10: #{salary_predictor_forward.1} parent=1 // pred_check
      _
    $region11: #{salary_predictor_forward.1} parent=1 // pred_check_branch
      %31 = sbr.rel (0) target = $region13
    $region12: #{salary_predictor_forward.1} parent=1 // pred_region
      %s33 = ssub.s32 4096, 4096
      %34 = vsyncadd [#allocation5], %s33
      %s35 = sshll.u32 [#allocation4], 4
      %s36 = int_to_ptr.vmem [resolvable:$true] %s35
      %41 = dma.hbm_to_vmem [thread:$0]  %s2, 4096, %s36, [#allocation5], 256, 256, 16
    $region13: #{salary_predictor_forward.1} parent=1 // pred_fallthru
      _
    // Predicated region
    $region14: #{salary_predictor_forward.1} parent=1 // pred_check
      _
    $region15: #{salary_predictor_forward.1} parent=1 // pred_check_branch
      %43 = sbr.rel (0) target = $region17
    $region16: #{salary_predictor_forward.1} parent=1 // pred_region
      _
    $region17: #{salary_predictor_forward.1} parent=1 // pred_fallthru
      _
    // Predicated region
    $region18: #{salary_predictor_forward.1} parent=1 // pred_check
      _
    $region19: #{salary_predictor_forward.1} parent=1 // pred_check_branch
      %45 = sbr.rel (0) target = $region21
    $region20: #{salary_predictor_forward.1} parent=1 // pred_region
      _
    $region21: #{salary_predictor_forward.1} parent=1 // pred_fallthru
      _
    // Predicated region
    $region22: #{salary_predictor_forward.1} parent=1 // pred_check
      _
    $region23: #{salary_predictor_forward.1} parent=1 // pred_check_branch
      %47 = sbr.rel (0) target = $region25
    $region24: #{salary_predictor_forward.1} parent=1 // pred_region
      _
    $region25: #{salary_predictor_forward.1} parent=1 // pred_fallthru
      _
    // Predicated region
    $region26: #{salary_predictor_forward.1} parent=1 // pred_check
      _
    $region27: #{salary_predictor_forward.1} parent=1 // pred_check_branch
      %49 = sbr.rel (0) target = $region29
    $region28: #{salary_predictor_forward.1} parent=1 // pred_region
      _
    $region29: #{salary_predictor_forward.1} parent=1 // pred_fallthru
      _
    // Predicated region
    $region30: #{salary_predictor_forward.1} parent=1 // pred_check
      _
    $region31: #{salary_predictor_forward.1} parent=1 // pred_check_branch
      %51 = sbr.rel (0) target = $region33
    $region32: #{salary_predictor_forward.1} parent=1 // pred_region
      _
    $region33: #{salary_predictor_forward.1} parent=1 // pred_fallthru
      _
    // Predicated region
    $region34: #{salary_predictor_forward.1} parent=1 // pred_check
      _
    $region35: #{salary_predictor_forward.1} parent=1 // pred_check_branch
      %53 = sbr.rel (0) target = $region37
    $region36: #{salary_predictor_forward.1} parent=1 // pred_region
      _
    $region37: #{salary_predictor_forward.1} parent=1 // pred_fallthru
      _
    // Predicated region
    $region38: #{salary_predictor_forward.1} parent=1 // pred_check
      _
    $region39: #{salary_predictor_forward.1} parent=1 // pred_check_branch
      %55 = sbr.rel (0) target = $region41
    $region40: #{salary_predictor_forward.1} parent=1 // pred_region
      %56 = dma.done [#allocation3], 4096
    $region41: #{salary_predictor_forward.1} parent=1 // pred_fallthru
      _
    // Predicated region
    $region42: #{salary_predictor_forward.1} parent=1 // pred_check
      _
    $region43: #{salary_predictor_forward.1} parent=1 // pred_check_branch
      %58 = sbr.rel (0) target = $region45
    $region44: #{salary_predictor_forward.1} parent=1 // pred_region
      %59 = dma.done [#allocation5], 4096
    $region45: #{salary_predictor_forward.1} parent=1 // pred_fallthru
      _
    %v61 = vld [vmem:[%s0] sm:$0xff]
    %v62 = vpack.c.bf16 %v61, %v61
    %v63 = vld [vmem:[#allocation2] sm:$0xff]
    %v64 = vld [vmem:[#allocation2 + $0x8] sm:$0xff]
    %v65 = vld [vmem:[#allocation2 + $0x10] sm:$0xff]
    %v66 = vld [vmem:[#allocation2 + $0x18] sm:$0xff]
    %v67 = vld [vmem:[#allocation2 + $0x20] sm:$0xff]
    %v68 = vld [vmem:[#allocation2 + $0x28] sm:$0xff]
    %v69 = vld [vmem:[#allocation2 + $0x30] sm:$0xff]
    %v70 = vld [vmem:[#allocation2 + $0x38] sm:$0xff]
    %v71 = vld [vmem:[#allocation2 + $0x40] sm:$0xff]
    %v72 = vld [vmem:[#allocation2 + $0x48] sm:$0xff]
    %v73 = vld [vmem:[#allocation2 + $0x50] sm:$0xff]
    %v74 = vld [vmem:[#allocation2 + $0x58] sm:$0xff]
    %v75 = vld [vmem:[#allocation2 + $0x60] sm:$0xff]
    %v76 = vld [vmem:[#allocation2 + $0x68] sm:$0xff]
    %v77 = vld [vmem:[#allocation2 + $0x70] sm:$0xff]
    %v78 = vld [vmem:[#allocation2 + $0x78] sm:$0xff]
    %v79 = vld [vmem:[#allocation2 + $0x80] sm:$0xff]
    %v80 = vld [vmem:[#allocation2 + $0x88] sm:$0xff]
    %v81 = vld [vmem:[#allocation2 + $0x90] sm:$0xff]
    %v82 = vld [vmem:[#allocation2 + $0x98] sm:$0xff]
    %v83 = vld [vmem:[#allocation2 + $0xa0] sm:$0xff]
    %v84 = vld [vmem:[#allocation2 + $0xa8] sm:$0xff]
    %v85 = vld [vmem:[#allocation2 + $0xb0] sm:$0xff]
    %v86 = vld [vmem:[#allocation2 + $0xb8] sm:$0xff]
    %v87 = vld [vmem:[#allocation2 + $0xc0] sm:$0xff]
    %v88 = vld [vmem:[#allocation2 + $0xc8] sm:$0xff]
    %v89 = vld [vmem:[#allocation2 + $0xd0] sm:$0xff]
    %v90 = vld [vmem:[#allocation2 + $0xd8] sm:$0xff]
    %v91 = vld [vmem:[#allocation2 + $0xe0] sm:$0xff]
    %v92 = vld [vmem:[#allocation2 + $0xe8] sm:$0xff]
    %v93 = vld [vmem:[#allocation2 + $0xf0] sm:$0xff]
    %v94 = vld [vmem:[#allocation2 + $0xf8] sm:$0xff]
    %v95 = vld [vmem:[%s3] sm:$0xf]
    %v97 = vlaneseq
    %v98 = vshrl.u32 %v97, 7
    %v99 = vsub.s32 0, %v98
    %v100 = vrot.slane %v95, %v99
    %v101 = vlaneseq
    %v102 = vshrl.u32 %v101, 7
    %v103 = vsub.s32 1, %v102
    %v104 = vrot.slane %v95, %v103
    %v105 = vlaneseq
    %v106 = vshrl.u32 %v105, 7
    %v107 = vsub.s32 2, %v106
    %v108 = vrot.slane %v95, %v107
    %v109 = vlaneseq
    %v110 = vshrl.u32 %v109, 7
    %v111 = vsub.s32 3, %v110
    %v112 = vrot.slane %v95, %v111
    %v149 = vunpack.c.l.b16 %v63
    %v150 = vunpack.c.h.b16 %v63
    %v151 = vunpack.c.l.b16 %v64
    %v152 = vunpack.c.h.b16 %v64
    %v153 = vunpack.c.l.b16 %v65
    %v154 = vunpack.c.h.b16 %v65
    %v155 = vunpack.c.l.b16 %v66
    %v156 = vunpack.c.h.b16 %v66
    %v157 = vunpack.c.l.b16 %v67
    %v158 = vunpack.c.h.b16 %v67
    %v159 = vunpack.c.l.b16 %v68
    %v160 = vunpack.c.h.b16 %v68
    %v161 = vunpack.c.l.b16 %v69
    %v162 = vunpack.c.h.b16 %v69
    %v163 = vunpack.c.l.b16 %v70
    %v164 = vunpack.c.h.b16 %v70
    %v165 = vunpack.c.l.b16 %v71
    %v166 = vunpack.c.h.b16 %v71
    %v167 = vunpack.c.l.b16 %v72
    %v168 = vunpack.c.h.b16 %v72
    %v169 = vunpack.c.l.b16 %v73
    %v170 = vunpack.c.h.b16 %v73
    %v171 = vunpack.c.l.b16 %v74
    %v172 = vunpack.c.h.b16 %v74
    %v173 = vunpack.c.l.b16 %v75
    %v174 = vunpack.c.h.b16 %v75
    %v175 = vunpack.c.l.b16 %v76
    %v176 = vunpack.c.h.b16 %v76
    %v177 = vunpack.c.l.b16 %v77
    %v178 = vunpack.c.h.b16 %v77
    %v179 = vunpack.c.l.b16 %v78
    %v180 = vunpack.c.h.b16 %v78
    %v181 = vunpack.c.l.b16 %v79
    %v182 = vunpack.c.h.b16 %v79
    %v183 = vunpack.c.l.b16 %v80
    %v184 = vunpack.c.h.b16 %v80
    %v185 = vunpack.c.l.b16 %v81
    %v186 = vunpack.c.h.b16 %v81
    %v187 = vunpack.c.l.b16 %v82
    %v188 = vunpack.c.h.b16 %v82
    %v189 = vunpack.c.l.b16 %v83
    %v190 = vunpack.c.h.b16 %v83
    %v191 = vunpack.c.l.b16 %v84
    %v192 = vunpack.c.h.b16 %v84
    %v193 = vunpack.c.l.b16 %v85
    %v194 = vunpack.c.h.b16 %v85
    %v195 = vunpack.c.l.b16 %v86
    %v196 = vunpack.c.h.b16 %v86
    %v197 = vunpack.c.l.b16 %v87
    %v198 = vunpack.c.h.b16 %v87
    %v199 = vunpack.c.l.b16 %v88
    %v200 = vunpack.c.h.b16 %v88
    %v201 = vunpack.c.l.b16 %v89
    %v202 = vunpack.c.h.b16 %v89
    %v203 = vunpack.c.l.b16 %v90
    %v204 = vunpack.c.h.b16 %v90
    %v205 = vunpack.c.l.b16 %v91
    %v206 = vunpack.c.h.b16 %v91
    %v207 = vunpack.c.l.b16 %v92
    %v208 = vunpack.c.h.b16 %v92
    %v209 = vunpack.c.l.b16 %v93
    %v210 = vunpack.c.h.b16 %v93
    %v211 = vunpack.c.l.b16 %v94
    %v212 = vunpack.c.h.b16 %v94
    %v213 = vpack.c.b16 %v153, %v149
    %v214 = vpack.c.b16 %v154, %v150
    %v215 = vpack.c.b16 %v155, %v151
    %v216 = vpack.c.b16 %v156, %v152
    %v217 = vpack.c.b16 %v161, %v157
    %v218 = vpack.c.b16 %v162, %v158
    %v219 = vpack.c.b16 %v163, %v159
    %v220 = vpack.c.b16 %v164, %v160
    %v221 = vpack.c.b16 %v169, %v165
    %v222 = vpack.c.b16 %v170, %v166
    %v223 = vpack.c.b16 %v171, %v167
    %v224 = vpack.c.b16 %v172, %v168
    %v225 = vpack.c.b16 %v177, %v173
    %v226 = vpack.c.b16 %v178, %v174
    %v227 = vpack.c.b16 %v179, %v175
    %v228 = vpack.c.b16 %v180, %v176
    %v229 = vpack.c.b16 %v185, %v181
    %v230 = vpack.c.b16 %v186, %v182
    %v231 = vpack.c.b16 %v187, %v183
    %v232 = vpack.c.b16 %v188, %v184
    %v233 = vpack.c.b16 %v193, %v189
    %v234 = vpack.c.b16 %v194, %v190
    %v235 = vpack.c.b16 %v195, %v191
    %v236 = vpack.c.b16 %v196, %v192
    %v237 = vpack.c.b16 %v201, %v197
    %v238 = vpack.c.b16 %v202, %v198
    %v239 = vpack.c.b16 %v203, %v199
    %v240 = vpack.c.b16 %v204, %v200
    %v241 = vpack.c.b16 %v209, %v205
    %v242 = vpack.c.b16 %v210, %v206
    %v243 = vpack.c.b16 %v211, %v207
    %v244 = vpack.c.b16 %v212, %v208
    %277 = vmatprep.subr.bf16.mxu0 %v214
    %278 = vmatpush1.bf16.msra.mxu0 %v213
    %279 = vmatprep.subr.bf16.mxu0 %v218
    %280 = vmatpush1.bf16.msra.mxu0 %v217
    %281 = vmatprep.subr.bf16.mxu0 %v222
    %282 = vmatpush1.bf16.msra.mxu0 %v221
    %283 = vmatprep.subr.bf16.mxu0 %v226
    %284 = vmatpush1.bf16.msra.mxu0 %v225
    %285 = vmatprep.subr.bf16.mxu0 %v230
    %286 = vmatpush1.bf16.msra.mxu0 %v229
    %287 = vmatprep.subr.bf16.mxu0 %v234
    %288 = vmatpush1.bf16.msra.mxu0 %v233
    %289 = vmatprep.subr.bf16.mxu0 %v238
    %290 = vmatpush1.bf16.msra.mxu0 %v237
    %291 = vmatprep.subr.bf16.mxu0 %v242
    %292 = vmatpush1.bf16.msra.mxu0 %v241
    %293 = vmatprep.subr.bf16.mxu0 0
    %294 = vmatpush1.bf16.msra.mxu0 0
    %295 = vmatprep.subr.bf16.mxu0 0
    %296 = vmatpush1.bf16.msra.mxu0 0
    %297 = vmatprep.subr.bf16.mxu0 0
    %298 = vmatpush1.bf16.msra.mxu0 0
    %299 = vmatprep.subr.bf16.mxu0 0
    %300 = vmatpush1.bf16.msra.mxu0 0
    %301 = vmatprep.subr.bf16.mxu0 0
    %302 = vmatpush1.bf16.msra.mxu0 0
    %303 = vmatprep.subr.bf16.mxu0 0
    %304 = vmatpush1.bf16.msra.mxu0 0
    %305 = vmatprep.subr.bf16.mxu0 0
    %306 = vmatpush1.bf16.msra.mxu0 0
    %307 = vmatprep.subr.bf16.mxu0 0
    %308 = vmatpush1.bf16.msra.mxu0 0
    %309 = vmatprep.mubr.bf16.mxu0 0
    %310 = vmatmul.mubr.bf16.gmra.mrb[0].mxu0 %v62
    %v311 = vpop.f32.mrb[0].mxu0
    %v312 = vadd.f32 %v100, %v311
    %v313 = vpop.f32.mrb[0].mxu0
    %v314 = vadd.f32 %v104, %v313
    %v315 = vpop.f32.mrb[0].mxu0
    %v316 = vpop.f32.mrb[0].mxu0
    %317 = vdwg.mxu0
    %318 = vmatprep.subr.bf16.mxu0 %v216
    %319 = vmatpush1.bf16.msra.mxu0 %v215
    %320 = vmatprep.subr.bf16.mxu0 %v220
    %321 = vmatpush1.bf16.msra.mxu0 %v219
    %322 = vmatprep.subr.bf16.mxu0 %v224
    %323 = vmatpush1.bf16.msra.mxu0 %v223
    %324 = vmatprep.subr.bf16.mxu0 %v228
    %325 = vmatpush1.bf16.msra.mxu0 %v227
    %326 = vmatprep.subr.bf16.mxu0 %v232
    %327 = vmatpush1.bf16.msra.mxu0 %v231
    %328 = vmatprep.subr.bf16.mxu0 %v236
    %329 = vmatpush1.bf16.msra.mxu0 %v235
    %330 = vmatprep.subr.bf16.mxu0 %v240
    %331 = vmatpush1.bf16.msra.mxu0 %v239
    %332 = vmatprep.subr.bf16.mxu0 %v244
    %333 = vmatpush1.bf16.msra.mxu0 %v243
    %334 = vmatprep.subr.bf16.mxu0 0
    %335 = vmatpush1.bf16.msra.mxu0 0
    %336 = vmatprep.subr.bf16.mxu0 0
    %337 = vmatpush1.bf16.msra.mxu0 0
    %338 = vmatprep.subr.bf16.mxu0 0
    %339 = vmatpush1.bf16.msra.mxu0 0
    %340 = vmatprep.subr.bf16.mxu0 0
    %341 = vmatpush1.bf16.msra.mxu0 0
    %342 = vmatprep.subr.bf16.mxu0 0
    %343 = vmatpush1.bf16.msra.mxu0 0
    %344 = vmatprep.subr.bf16.mxu0 0
    %345 = vmatpush1.bf16.msra.mxu0 0
    %346 = vmatprep.subr.bf16.mxu0 0
    %347 = vmatpush1.bf16.msra.mxu0 0
    %348 = vmatprep.subr.bf16.mxu0 0
    %349 = vmatpush1.bf16.msra.mxu0 0
    %350 = vmatprep.mubr.bf16.mxu0 0
    %351 = vmatmul.mubr.bf16.gmra.mrb[0].mxu0 %v62
    %v352 = vpop.f32.mrb[0].mxu0
    %v353 = vadd.f32 %v108, %v352
    %v354 = vpop.f32.mrb[0].mxu0
    %v355 = vadd.f32 %v112, %v354
    %v356 = vpop.f32.mrb[0].mxu0
    %v357 = vpop.f32.mrb[0].mxu0
    %358 = vdwg.mxu0
    %v359 = vld [vmem:[#allocation4] sm:$0xff]
    %v360 = vld [vmem:[#allocation4 + $0x8] sm:$0xff]
    %v361 = vld [vmem:[#allocation4 + $0x10] sm:$0xff]
    %v362 = vld [vmem:[#allocation4 + $0x18] sm:$0xff]
    %v363 = vld [vmem:[#allocation4 + $0x20] sm:$0xff]
    %v364 = vld [vmem:[#allocation4 + $0x28] sm:$0xff]
    %v365 = vld [vmem:[#allocation4 + $0x30] sm:$0xff]
    %v366 = vld [vmem:[#allocation4 + $0x38] sm:$0xff]
    %v367 = vld [vmem:[#allocation4 + $0x40] sm:$0xff]
    %v368 = vld [vmem:[#allocation4 + $0x48] sm:$0xff]
    %v369 = vld [vmem:[#allocation4 + $0x50] sm:$0xff]
    %v370 = vld [vmem:[#allocation4 + $0x58] sm:$0xff]
    %v371 = vld [vmem:[#allocation4 + $0x60] sm:$0xff]
    %v372 = vld [vmem:[#allocation4 + $0x68] sm:$0xff]
    %v373 = vld [vmem:[#allocation4 + $0x70] sm:$0xff]
    %v374 = vld [vmem:[#allocation4 + $0x78] sm:$0xff]
    %v375 = vld [vmem:[#allocation4 + $0x80] sm:$0xff]
    %v376 = vld [vmem:[#allocation4 + $0x88] sm:$0xff]
    %v377 = vld [vmem:[#allocation4 + $0x90] sm:$0xff]
    %v378 = vld [vmem:[#allocation4 + $0x98] sm:$0xff]
    %v379 = vld [vmem:[#allocation4 + $0xa0] sm:$0xff]
    %v380 = vld [vmem:[#allocation4 + $0xa8] sm:$0xff]
    %v381 = vld [vmem:[#allocation4 + $0xb0] sm:$0xff]
    %v382 = vld [vmem:[#allocation4 + $0xb8] sm:$0xff]
    %v383 = vld [vmem:[#allocation4 + $0xc0] sm:$0xff]
    %v384 = vld [vmem:[#allocation4 + $0xc8] sm:$0xff]
    %v385 = vld [vmem:[#allocation4 + $0xd0] sm:$0xff]
    %v386 = vld [vmem:[#allocation4 + $0xd8] sm:$0xff]
    %v387 = vld [vmem:[#allocation4 + $0xe0] sm:$0xff]
    %v388 = vld [vmem:[#allocation4 + $0xe8] sm:$0xff]
    %v389 = vld [vmem:[#allocation4 + $0xf0] sm:$0xff]
    %v390 = vld [vmem:[#allocation4 + $0xf8] sm:$0xff]
    %v423 = vunpack.c.l.b16 %v359
    %v424 = vunpack.c.h.b16 %v359
    %v425 = vunpack.c.l.b16 %v360
    %v426 = vunpack.c.h.b16 %v360
    %v427 = vunpack.c.l.b16 %v361
    %v428 = vunpack.c.h.b16 %v361
    %v429 = vunpack.c.l.b16 %v362
    %v430 = vunpack.c.h.b16 %v362
    %v431 = vunpack.c.l.b16 %v363
    %v432 = vunpack.c.h.b16 %v363
    %v433 = vunpack.c.l.b16 %v364
    %v434 = vunpack.c.h.b16 %v364
    %v435 = vunpack.c.l.b16 %v365
    %v436 = vunpack.c.h.b16 %v365
    %v437 = vunpack.c.l.b16 %v366
    %v438 = vunpack.c.h.b16 %v366
    %v439 = vunpack.c.l.b16 %v367
    %v440 = vunpack.c.h.b16 %v367
    %v441 = vunpack.c.l.b16 %v368
    %v442 = vunpack.c.h.b16 %v368
    %v443 = vunpack.c.l.b16 %v369
    %v444 = vunpack.c.h.b16 %v369
    %v445 = vunpack.c.l.b16 %v370
    %v446 = vunpack.c.h.b16 %v370
    %v447 = vunpack.c.l.b16 %v371
    %v448 = vunpack.c.h.b16 %v371
    %v449 = vunpack.c.l.b16 %v372
    %v450 = vunpack.c.h.b16 %v372
    %v451 = vunpack.c.l.b16 %v373
    %v452 = vunpack.c.h.b16 %v373
    %v453 = vunpack.c.l.b16 %v374
    %v454 = vunpack.c.h.b16 %v374
    %v455 = vunpack.c.l.b16 %v375
    %v456 = vunpack.c.h.b16 %v375
    %v457 = vunpack.c.l.b16 %v376
    %v458 = vunpack.c.h.b16 %v376
    %v459 = vunpack.c.l.b16 %v377
    %v460 = vunpack.c.h.b16 %v377
    %v461 = vunpack.c.l.b16 %v378
    %v462 = vunpack.c.h.b16 %v378
    %v463 = vunpack.c.l.b16 %v379
    %v464 = vunpack.c.h.b16 %v379
    %v465 = vunpack.c.l.b16 %v380
    %v466 = vunpack.c.h.b16 %v380
    %v467 = vunpack.c.l.b16 %v381
    %v468 = vunpack.c.h.b16 %v381
    %v469 = vunpack.c.l.b16 %v382
    %v470 = vunpack.c.h.b16 %v382
    %v471 = vunpack.c.l.b16 %v383
    %v472 = vunpack.c.h.b16 %v383
    %v473 = vunpack.c.l.b16 %v384
    %v474 = vunpack.c.h.b16 %v384
    %v475 = vunpack.c.l.b16 %v385
    %v476 = vunpack.c.h.b16 %v385
    %v477 = vunpack.c.l.b16 %v386
    %v478 = vunpack.c.h.b16 %v386
    %v479 = vunpack.c.l.b16 %v387
    %v480 = vunpack.c.h.b16 %v387
    %v481 = vunpack.c.l.b16 %v388
    %v482 = vunpack.c.h.b16 %v388
    %v483 = vunpack.c.l.b16 %v389
    %v484 = vunpack.c.h.b16 %v389
    %v485 = vunpack.c.l.b16 %v390
    %v486 = vunpack.c.h.b16 %v390
    %v487 = vpack.c.b16 %v427, %v423
    %v488 = vpack.c.b16 %v428, %v424
    %v489 = vpack.c.b16 %v429, %v425
    %v490 = vpack.c.b16 %v430, %v426
    %v491 = vpack.c.b16 %v435, %v431
    %v492 = vpack.c.b16 %v436, %v432
    %v493 = vpack.c.b16 %v437, %v433
    %v494 = vpack.c.b16 %v438, %v434
    %v495 = vpack.c.b16 %v443, %v439
    %v496 = vpack.c.b16 %v444, %v440
    %v497 = vpack.c.b16 %v445, %v441
    %v498 = vpack.c.b16 %v446, %v442
    %v499 = vpack.c.b16 %v451, %v447
    %v500 = vpack.c.b16 %v452, %v448
    %v501 = vpack.c.b16 %v453, %v449
    %v502 = vpack.c.b16 %v454, %v450
    %v503 = vpack.c.b16 %v459, %v455
    %v504 = vpack.c.b16 %v460, %v456
    %v505 = vpack.c.b16 %v461, %v457
    %v506 = vpack.c.b16 %v462, %v458
    %v507 = vpack.c.b16 %v467, %v463
    %v508 = vpack.c.b16 %v468, %v464
    %v509 = vpack.c.b16 %v469, %v465
    %v510 = vpack.c.b16 %v470, %v466
    %v511 = vpack.c.b16 %v475, %v471
    %v512 = vpack.c.b16 %v476, %v472
    %v513 = vpack.c.b16 %v477, %v473
    %v514 = vpack.c.b16 %v478, %v474
    %v515 = vpack.c.b16 %v483, %v479
    %v516 = vpack.c.b16 %v484, %v480
    %v517 = vpack.c.b16 %v485, %v481
    %v518 = vpack.c.b16 %v486, %v482
    %551 = vmatprep.subr.bf16.mxu0 %v488
    %552 = vmatpush1.bf16.msra.mxu0 %v487
    %553 = vmatprep.subr.bf16.mxu0 %v492
    %554 = vmatpush1.bf16.msra.mxu0 %v491
    %555 = vmatprep.subr.bf16.mxu0 %v496
    %556 = vmatpush1.bf16.msra.mxu0 %v495
    %557 = vmatprep.subr.bf16.mxu0 %v500
    %558 = vmatpush1.bf16.msra.mxu0 %v499
    %559 = vmatprep.subr.bf16.mxu0 %v504
    %560 = vmatpush1.bf16.msra.mxu0 %v503
    %561 = vmatprep.subr.bf16.mxu0 %v508
    %562 = vmatpush1.bf16.msra.mxu0 %v507
    %563 = vmatprep.subr.bf16.mxu0 %v512
    %564 = vmatpush1.bf16.msra.mxu0 %v511
    %565 = vmatprep.subr.bf16.mxu0 %v516
    %566 = vmatpush1.bf16.msra.mxu0 %v515
    %567 = vmatprep.subr.bf16.mxu0 0
    %568 = vmatpush1.bf16.msra.mxu0 0
    %569 = vmatprep.subr.bf16.mxu0 0
    %570 = vmatpush1.bf16.msra.mxu0 0
    %571 = vmatprep.subr.bf16.mxu0 0
    %572 = vmatpush1.bf16.msra.mxu0 0
    %573 = vmatprep.subr.bf16.mxu0 0
    %574 = vmatpush1.bf16.msra.mxu0 0
    %575 = vmatprep.subr.bf16.mxu0 0
    %576 = vmatpush1.bf16.msra.mxu0 0
    %577 = vmatprep.subr.bf16.mxu0 0
    %578 = vmatpush1.bf16.msra.mxu0 0
    %579 = vmatprep.subr.bf16.mxu0 0
    %580 = vmatpush1.bf16.msra.mxu0 0
    %581 = vmatprep.subr.bf16.mxu0 0
    %582 = vmatpush1.bf16.msra.mxu0 0
    %583 = vmatprep.mubr.bf16.mxu0 0
    %584 = vmatmul.mubr.bf16.gmra.mrb[0].mxu0 %v62
    %v585 = vpop.f32.mrb[0].mxu0
    %v586 = vadd.f32 %v100, %v585
    %v587 = vpop.f32.mrb[0].mxu0
    %v588 = vadd.f32 %v104, %v587
    %v589 = vpop.f32.mrb[0].mxu0
    %v590 = vpop.f32.mrb[0].mxu0
    %591 = vdwg.mxu0
    %592 = vmatprep.subr.bf16.mxu0 %v490
    %593 = vmatpush1.bf16.msra.mxu0 %v489
    %594 = vmatprep.subr.bf16.mxu0 %v494
    %595 = vmatpush1.bf16.msra.mxu0 %v493
    %596 = vmatprep.subr.bf16.mxu0 %v498
    %597 = vmatpush1.bf16.msra.mxu0 %v497
    %598 = vmatprep.subr.bf16.mxu0 %v502
    %599 = vmatpush1.bf16.msra.mxu0 %v501
    %600 = vmatprep.subr.bf16.mxu0 %v506
    %601 = vmatpush1.bf16.msra.mxu0 %v505
    %602 = vmatprep.subr.bf16.mxu0 %v510
    %603 = vmatpush1.bf16.msra.mxu0 %v509
    %604 = vmatprep.subr.bf16.mxu0 %v514
    %605 = vmatpush1.bf16.msra.mxu0 %v513
    %606 = vmatprep.subr.bf16.mxu0 %v518
    %607 = vmatpush1.bf16.msra.mxu0 %v517
    %608 = vmatprep.subr.bf16.mxu0 0
    %609 = vmatpush1.bf16.msra.mxu0 0
    %610 = vmatprep.subr.bf16.mxu0 0
    %611 = vmatpush1.bf16.msra.mxu0 0
    %612 = vmatprep.subr.bf16.mxu0 0
    %613 = vmatpush1.bf16.msra.mxu0 0
    %614 = vmatprep.subr.bf16.mxu0 0
    %615 = vmatpush1.bf16.msra.mxu0 0
    %616 = vmatprep.subr.bf16.mxu0 0
    %617 = vmatpush1.bf16.msra.mxu0 0
    %618 = vmatprep.subr.bf16.mxu0 0
    %619 = vmatpush1.bf16.msra.mxu0 0
    %620 = vmatprep.subr.bf16.mxu0 0
    %621 = vmatpush1.bf16.msra.mxu0 0
    %622 = vmatprep.subr.bf16.mxu0 0
    %623 = vmatpush1.bf16.msra.mxu0 0
    %624 = vmatprep.mubr.bf16.mxu0 0
    %625 = vmatmul.mubr.bf16.gmra.mrb[0].mxu0 %v62
    %v626 = vpop.f32.mrb[0].mxu0
    %v627 = vadd.f32 %v108, %v626
    %v628 = vpop.f32.mrb[0].mxu0
    %v629 = vadd.f32 %v112, %v628
    %v630 = vpop.f32.mrb[0].mxu0
    %v631 = vpop.f32.mrb[0].mxu0
    %632 = vdwg.mxu0
    %v633 = vmax.f32 %v312, 0.0
    %v634 = vmax.f32 %v314, 0.0
    %v635 = vmax.f32 %v353, 0.0
    %v636 = vmax.f32 %v355, 0.0
    %v637 = vpack.c.bf16 %v633, %v633
    %v638 = vpack.c.bf16 %v634, %v634
    %v639 = vpack.c.bf16 %v635, %v635
    %v640 = vpack.c.bf16 %v636, %v636
    %v641 = vmax.f32 %v586, 0.0
    %v642 = vmax.f32 %v588, 0.0
    %v643 = vmax.f32 %v627, 0.0
    %v644 = vmax.f32 %v629, 0.0
    %v645 = vpack.c.bf16 %v641, %v641
    %v646 = vpack.c.bf16 %v642, %v642
    %v647 = vpack.c.bf16 %v643, %v643
    %v648 = vpack.c.bf16 %v644, %v644
    %v649 = vld [vmem:[%s4] sm:$0xff]
    %v650 = vld [vmem:[%s4 + $0x8] sm:$0xff]
    %v651 = vld [vmem:[%s4 + $0x10] sm:$0xff]
    %v652 = vld [vmem:[%s4 + $0x18] sm:$0xff]
    %v653 = vld [vmem:[%s4 + $0x20] sm:$0xff]
    %v654 = vld [vmem:[%s4 + $0x28] sm:$0xff]
    %v655 = vld [vmem:[%s4 + $0x30] sm:$0xff]
    %v656 = vld [vmem:[%s4 + $0x38] sm:$0xff]
    %v657 = vld [vmem:[%s4 + $0x40] sm:$0xff]
    %v658 = vld [vmem:[%s4 + $0x48] sm:$0xff]
    %v659 = vld [vmem:[%s4 + $0x50] sm:$0xff]
    %v660 = vld [vmem:[%s4 + $0x58] sm:$0xff]
    %v661 = vld [vmem:[%s4 + $0x60] sm:$0xff]
    %v662 = vld [vmem:[%s4 + $0x68] sm:$0xff]
    %v663 = vld [vmem:[%s4 + $0x70] sm:$0xff]
    %v664 = vld [vmem:[%s4 + $0x78] sm:$0xff]
    %v665 = vld [vmem:[%s4 + $0x80] sm:$0xff]
    %v666 = vld [vmem:[%s4 + $0x88] sm:$0xff]
    %v667 = vld [vmem:[%s4 + $0x90] sm:$0xff]
    %v668 = vld [vmem:[%s4 + $0x98] sm:$0xff]
    %v669 = vld [vmem:[%s4 + $0xa0] sm:$0xff]
    %v670 = vld [vmem:[%s4 + $0xa8] sm:$0xff]
    %v671 = vld [vmem:[%s4 + $0xb0] sm:$0xff]
    %v672 = vld [vmem:[%s4 + $0xb8] sm:$0xff]
    %v673 = vld [vmem:[%s4 + $0xc0] sm:$0xff]
    %v674 = vld [vmem:[%s4 + $0xc8] sm:$0xff]
    %v675 = vld [vmem:[%s4 + $0xd0] sm:$0xff]
    %v676 = vld [vmem:[%s4 + $0xd8] sm:$0xff]
    %v677 = vld [vmem:[%s4 + $0xe0] sm:$0xff]
    %v678 = vld [vmem:[%s4 + $0xe8] sm:$0xff]
    %v679 = vld [vmem:[%s4 + $0xf0] sm:$0xff]
    %v680 = vld [vmem:[%s4 + $0xf8] sm:$0xff]
    %v681 = vld [vmem:[%s4 + $0x100] sm:$0xff]
    %v682 = vld [vmem:[%s4 + $0x108] sm:$0xff]
    %v683 = vld [vmem:[%s4 + $0x110] sm:$0xff]
    %v684 = vld [vmem:[%s4 + $0x118] sm:$0xff]
    %v685 = vld [vmem:[%s4 + $0x120] sm:$0xff]
    %v686 = vld [vmem:[%s4 + $0x128] sm:$0xff]
    %v687 = vld [vmem:[%s4 + $0x130] sm:$0xff]
    %v688 = vld [vmem:[%s4 + $0x138] sm:$0xff]
    %v689 = vld [vmem:[%s4 + $0x140] sm:$0xff]
    %v690 = vld [vmem:[%s4 + $0x148] sm:$0xff]
    %v691 = vld [vmem:[%s4 + $0x150] sm:$0xff]
    %v692 = vld [vmem:[%s4 + $0x158] sm:$0xff]
    %v693 = vld [vmem:[%s4 + $0x160] sm:$0xff]
    %v694 = vld [vmem:[%s4 + $0x168] sm:$0xff]
    %v695 = vld [vmem:[%s4 + $0x170] sm:$0xff]
    %v696 = vld [vmem:[%s4 + $0x178] sm:$0xff]
    %v697 = vld [vmem:[%s4 + $0x180] sm:$0xff]
    %v698 = vld [vmem:[%s4 + $0x188] sm:$0xff]
    %v699 = vld [vmem:[%s4 + $0x190] sm:$0xff]
    %v700 = vld [vmem:[%s4 + $0x198] sm:$0xff]
    %v701 = vld [vmem:[%s4 + $0x1a0] sm:$0xff]
    %v702 = vld [vmem:[%s4 + $0x1a8] sm:$0xff]
    %v703 = vld [vmem:[%s4 + $0x1b0] sm:$0xff]
    %v704 = vld [vmem:[%s4 + $0x1b8] sm:$0xff]
    %v705 = vld [vmem:[%s4 + $0x1c0] sm:$0xff]
    %v706 = vld [vmem:[%s4 + $0x1c8] sm:$0xff]
    %v707 = vld [vmem:[%s4 + $0x1d0] sm:$0xff]
    %v708 = vld [vmem:[%s4 + $0x1d8] sm:$0xff]
    %v709 = vld [vmem:[%s4 + $0x1e0] sm:$0xff]
    %v710 = vld [vmem:[%s4 + $0x1e8] sm:$0xff]
    %v711 = vld [vmem:[%s4 + $0x1f0] sm:$0xff]
    %v712 = vld [vmem:[%s4 + $0x1f8] sm:$0xff]
    %v713 = vld [vmem:[%s5] sm:$0x3]
    %v715 = vlaneseq
    %v716 = vshrl.u32 %v715, 7
    %v717 = vsub.s32 0, %v716
    %v718 = vrot.slane %v713, %v717
    %v719 = vlaneseq
    %v720 = vshrl.u32 %v719, 7
    %v721 = vsub.s32 1, %v720
    %v722 = vrot.slane %v713, %v721
    %v789 = vunpack.c.l.b16 %v649
    %v790 = vunpack.c.h.b16 %v649
    %v791 = vunpack.c.l.b16 %v650
    %v792 = vunpack.c.h.b16 %v650
    %v793 = vunpack.c.l.b16 %v651
    %v794 = vunpack.c.h.b16 %v651
    %v795 = vunpack.c.l.b16 %v652
    %v796 = vunpack.c.h.b16 %v652
    %v797 = vunpack.c.l.b16 %v653
    %v798 = vunpack.c.h.b16 %v653
    %v799 = vunpack.c.l.b16 %v654
    %v800 = vunpack.c.h.b16 %v654
    %v801 = vunpack.c.l.b16 %v655
    %v802 = vunpack.c.h.b16 %v655
    %v803 = vunpack.c.l.b16 %v656
    %v804 = vunpack.c.h.b16 %v656
    %v805 = vunpack.c.l.b16 %v657
    %v806 = vunpack.c.h.b16 %v657
    %v807 = vunpack.c.l.b16 %v658
    %v808 = vunpack.c.h.b16 %v658
    %v809 = vunpack.c.l.b16 %v659
    %v810 = vunpack.c.h.b16 %v659
    %v811 = vunpack.c.l.b16 %v660
    %v812 = vunpack.c.h.b16 %v660
    %v813 = vunpack.c.l.b16 %v661
    %v814 = vunpack.c.h.b16 %v661
    %v815 = vunpack.c.l.b16 %v662
    %v816 = vunpack.c.h.b16 %v662
    %v817 = vunpack.c.l.b16 %v663
    %v818 = vunpack.c.h.b16 %v663
    %v819 = vunpack.c.l.b16 %v664
    %v820 = vunpack.c.h.b16 %v664
    %v821 = vunpack.c.l.b16 %v665
    %v822 = vunpack.c.h.b16 %v665
    %v823 = vunpack.c.l.b16 %v666
    %v824 = vunpack.c.h.b16 %v666
    %v825 = vunpack.c.l.b16 %v667
    %v826 = vunpack.c.h.b16 %v667
    %v827 = vunpack.c.l.b16 %v668
    %v828 = vunpack.c.h.b16 %v668
    %v829 = vunpack.c.l.b16 %v669
    %v830 = vunpack.c.h.b16 %v669
    %v831 = vunpack.c.l.b16 %v670
    %v832 = vunpack.c.h.b16 %v670
    %v833 = vunpack.c.l.b16 %v671
    %v834 = vunpack.c.h.b16 %v671
    %v835 = vunpack.c.l.b16 %v672
    %v836 = vunpack.c.h.b16 %v672
    %v837 = vunpack.c.l.b16 %v673
    %v838 = vunpack.c.h.b16 %v673
    %v839 = vunpack.c.l.b16 %v674
    %v840 = vunpack.c.h.b16 %v674
    %v841 = vunpack.c.l.b16 %v675
    %v842 = vunpack.c.h.b16 %v675
    %v843 = vunpack.c.l.b16 %v676
    %v844 = vunpack.c.h.b16 %v676
    %v845 = vunpack.c.l.b16 %v677
    %v846 = vunpack.c.h.b16 %v677
    %v847 = vunpack.c.l.b16 %v678
    %v848 = vunpack.c.h.b16 %v678
    %v849 = vunpack.c.l.b16 %v679
    %v850 = vunpack.c.h.b16 %v679
    %v851 = vunpack.c.l.b16 %v680
    %v852 = vunpack.c.h.b16 %v680
    %v853 = vunpack.c.l.b16 %v681
    %v854 = vunpack.c.h.b16 %v681
    %v855 = vunpack.c.l.b16 %v682
    %v856 = vunpack.c.h.b16 %v682
    %v857 = vunpack.c.l.b16 %v683
    %v858 = vunpack.c.h.b16 %v683
    %v859 = vunpack.c.l.b16 %v684
    %v860 = vunpack.c.h.b16 %v684
    %v861 = vunpack.c.l.b16 %v685
    %v862 = vunpack.c.h.b16 %v685
    %v863 = vunpack.c.l.b16 %v686
    %v864 = vunpack.c.h.b16 %v686
    %v865 = vunpack.c.l.b16 %v687
    %v866 = vunpack.c.h.b16 %v687
    %v867 = vunpack.c.l.b16 %v688
    %v868 = vunpack.c.h.b16 %v688
    %v869 = vunpack.c.l.b16 %v689
    %v870 = vunpack.c.h.b16 %v689
    %v871 = vunpack.c.l.b16 %v690
    %v872 = vunpack.c.h.b16 %v690
    %v873 = vunpack.c.l.b16 %v691
    %v874 = vunpack.c.h.b16 %v691
    %v875 = vunpack.c.l.b16 %v692
    %v876 = vunpack.c.h.b16 %v692
    %v877 = vunpack.c.l.b16 %v693
    %v878 = vunpack.c.h.b16 %v693
    %v879 = vunpack.c.l.b16 %v694
    %v880 = vunpack.c.h.b16 %v694
    %v881 = vunpack.c.l.b16 %v695
    %v882 = vunpack.c.h.b16 %v695
    %v883 = vunpack.c.l.b16 %v696
    %v884 = vunpack.c.h.b16 %v696
    %v885 = vunpack.c.l.b16 %v697
    %v886 = vunpack.c.h.b16 %v697
    %v887 = vunpack.c.l.b16 %v698
    %v888 = vunpack.c.h.b16 %v698
    %v889 = vunpack.c.l.b16 %v699
    %v890 = vunpack.c.h.b16 %v699
    %v891 = vunpack.c.l.b16 %v700
    %v892 = vunpack.c.h.b16 %v700
    %v893 = vunpack.c.l.b16 %v701
    %v894 = vunpack.c.h.b16 %v701
    %v895 = vunpack.c.l.b16 %v702
    %v896 = vunpack.c.h.b16 %v702
    %v897 = vunpack.c.l.b16 %v703
    %v898 = vunpack.c.h.b16 %v703
    %v899 = vunpack.c.l.b16 %v704
    %v900 = vunpack.c.h.b16 %v704
    %v901 = vunpack.c.l.b16 %v705
    %v902 = vunpack.c.h.b16 %v705
    %v903 = vunpack.c.l.b16 %v706
    %v904 = vunpack.c.h.b16 %v706
    %v905 = vunpack.c.l.b16 %v707
    %v906 = vunpack.c.h.b16 %v707
    %v907 = vunpack.c.l.b16 %v708
    %v908 = vunpack.c.h.b16 %v708
    %v909 = vunpack.c.l.b16 %v709
    %v910 = vunpack.c.h.b16 %v709
    %v911 = vunpack.c.l.b16 %v710
    %v912 = vunpack.c.h.b16 %v710
    %v913 = vunpack.c.l.b16 %v711
    %v914 = vunpack.c.h.b16 %v711
    %v915 = vunpack.c.l.b16 %v712
    %v916 = vunpack.c.h.b16 %v712
    %v917 = vpack.c.b16 %v791, %v789
    %v918 = vpack.c.b16 %v792, %v790
    %v919 = vpack.c.b16 %v795, %v793
    %v920 = vpack.c.b16 %v796, %v794
    %v921 = vpack.c.b16 %v799, %v797
    %v922 = vpack.c.b16 %v800, %v798
    %v923 = vpack.c.b16 %v803, %v801
    %v924 = vpack.c.b16 %v804, %v802
    %v925 = vpack.c.b16 %v807, %v805
    %v926 = vpack.c.b16 %v808, %v806
    %v927 = vpack.c.b16 %v811, %v809
    %v928 = vpack.c.b16 %v812, %v810
    %v929 = vpack.c.b16 %v815, %v813
    %v930 = vpack.c.b16 %v816, %v814
    %v931 = vpack.c.b16 %v819, %v817
    %v932 = vpack.c.b16 %v820, %v818
    %v933 = vpack.c.b16 %v823, %v821
    %v934 = vpack.c.b16 %v824, %v822
    %v935 = vpack.c.b16 %v827, %v825
    %v936 = vpack.c.b16 %v828, %v826
    %v937 = vpack.c.b16 %v831, %v829
    %v938 = vpack.c.b16 %v832, %v830
    %v939 = vpack.c.b16 %v835, %v833
    %v940 = vpack.c.b16 %v836, %v834
    %v941 = vpack.c.b16 %v839, %v837
    %v942 = vpack.c.b16 %v840, %v838
    %v943 = vpack.c.b16 %v843, %v841
    %v944 = vpack.c.b16 %v844, %v842
    %v945 = vpack.c.b16 %v847, %v845
    %v946 = vpack.c.b16 %v848, %v846
    %v947 = vpack.c.b16 %v851, %v849
    %v948 = vpack.c.b16 %v852, %v850
    %v949 = vpack.c.b16 %v855, %v853
    %v950 = vpack.c.b16 %v856, %v854
    %v951 = vpack.c.b16 %v859, %v857
    %v952 = vpack.c.b16 %v860, %v858
    %v953 = vpack.c.b16 %v863, %v861
    %v954 = vpack.c.b16 %v864, %v862
    %v955 = vpack.c.b16 %v867, %v865
    %v956 = vpack.c.b16 %v868, %v866
    %v957 = vpack.c.b16 %v871, %v869
    %v958 = vpack.c.b16 %v872, %v870
    %v959 = vpack.c.b16 %v875, %v873
    %v960 = vpack.c.b16 %v876, %v874
    %v961 = vpack.c.b16 %v879, %v877
    %v962 = vpack.c.b16 %v880, %v878
    %v963 = vpack.c.b16 %v883, %v881
    %v964 = vpack.c.b16 %v884, %v882
    %v965 = vpack.c.b16 %v887, %v885
    %v966 = vpack.c.b16 %v888, %v886
    %v967 = vpack.c.b16 %v891, %v889
    %v968 = vpack.c.b16 %v892, %v890
    %v969 = vpack.c.b16 %v895, %v893
    %v970 = vpack.c.b16 %v896, %v894
    %v971 = vpack.c.b16 %v899, %v897
    %v972 = vpack.c.b16 %v900, %v898
    %v973 = vpack.c.b16 %v903, %v901
    %v974 = vpack.c.b16 %v904, %v902
    %v975 = vpack.c.b16 %v907, %v905
    %v976 = vpack.c.b16 %v908, %v906
    %v977 = vpack.c.b16 %v911, %v909
    %v978 = vpack.c.b16 %v912, %v910
    %v979 = vpack.c.b16 %v915, %v913
    %v980 = vpack.c.b16 %v916, %v914
    %1045 = vmatprep.subr.bf16.mxu0 %v918
    %1046 = vmatpush1.bf16.msra.mxu0 %v917
    %1047 = vmatprep.subr.bf16.mxu0 %v920
    %1048 = vmatpush1.bf16.msra.mxu0 %v919
    %1049 = vmatprep.subr.bf16.mxu0 %v922
    %1050 = vmatpush1.bf16.msra.mxu0 %v921
    %1051 = vmatprep.subr.bf16.mxu0 %v924
    %1052 = vmatpush1.bf16.msra.mxu0 %v923
    %1053 = vmatprep.subr.bf16.mxu0 %v926
    %1054 = vmatpush1.bf16.msra.mxu0 %v925
    %1055 = vmatprep.subr.bf16.mxu0 %v928
    %1056 = vmatpush1.bf16.msra.mxu0 %v927
    %1057 = vmatprep.subr.bf16.mxu0 %v930
    %1058 = vmatpush1.bf16.msra.mxu0 %v929
    %1059 = vmatprep.subr.bf16.mxu0 %v932
    %1060 = vmatpush1.bf16.msra.mxu0 %v931
    %1061 = vmatprep.subr.bf16.mxu0 %v934
    %1062 = vmatpush1.bf16.msra.mxu0 %v933
    %1063 = vmatprep.subr.bf16.mxu0 %v936
    %1064 = vmatpush1.bf16.msra.mxu0 %v935
    %1065 = vmatprep.subr.bf16.mxu0 %v938
    %1066 = vmatpush1.bf16.msra.mxu0 %v937
    %1067 = vmatprep.subr.bf16.mxu0 %v940
    %1068 = vmatpush1.bf16.msra.mxu0 %v939
    %1069 = vmatprep.subr.bf16.mxu0 %v942
    %1070 = vmatpush1.bf16.msra.mxu0 %v941
    %1071 = vmatprep.subr.bf16.mxu0 %v944
    %1072 = vmatpush1.bf16.msra.mxu0 %v943
    %1073 = vmatprep.subr.bf16.mxu0 %v946
    %1074 = vmatpush1.bf16.msra.mxu0 %v945
    %1075 = vmatprep.subr.bf16.mxu0 %v948
    %1076 = vmatpush1.bf16.msra.mxu0 %v947
    %1077 = vmatprep.mubr.bf16.mxu0 %v638
    %1078 = vmatmul.mubr.bf16.gmra.mrb[0].mxu0 %v637
    %v1079 = vpop.f32.mrb[0].mxu0
    %v1080 = vadd.f32 %v718, %v1079
    %v1081 = vpop.f32.mrb[0].mxu0
    %v1082 = vadd.f32 %v722, %v1081
    %v1083 = vpop.f32.mrb[0].mxu0
    %v1084 = vpop.f32.mrb[0].mxu0
    %1085 = vdwg.mxu0
    %1086 = vmatprep.subr.bf16.mxu0 %v950
    %1087 = vmatpush1.bf16.msra.mxu0 %v949
    %1088 = vmatprep.subr.bf16.mxu0 %v952
    %1089 = vmatpush1.bf16.msra.mxu0 %v951
    %1090 = vmatprep.subr.bf16.mxu0 %v954
    %1091 = vmatpush1.bf16.msra.mxu0 %v953
    %1092 = vmatprep.subr.bf16.mxu0 %v956
    %1093 = vmatpush1.bf16.msra.mxu0 %v955
    %1094 = vmatprep.subr.bf16.mxu0 %v958
    %1095 = vmatpush1.bf16.msra.mxu0 %v957
    %1096 = vmatprep.subr.bf16.mxu0 %v960
    %1097 = vmatpush1.bf16.msra.mxu0 %v959
    %1098 = vmatprep.subr.bf16.mxu0 %v962
    %1099 = vmatpush1.bf16.msra.mxu0 %v961
    %1100 = vmatprep.subr.bf16.mxu0 %v964
    %1101 = vmatpush1.bf16.msra.mxu0 %v963
    %1102 = vmatprep.subr.bf16.mxu0 %v966
    %1103 = vmatpush1.bf16.msra.mxu0 %v965
    %1104 = vmatprep.subr.bf16.mxu0 %v968
    %1105 = vmatpush1.bf16.msra.mxu0 %v967
    %1106 = vmatprep.subr.bf16.mxu0 %v970
    %1107 = vmatpush1.bf16.msra.mxu0 %v969
    %1108 = vmatprep.subr.bf16.mxu0 %v972
    %1109 = vmatpush1.bf16.msra.mxu0 %v971
    %1110 = vmatprep.subr.bf16.mxu0 %v974
    %1111 = vmatpush1.bf16.msra.mxu0 %v973
    %1112 = vmatprep.subr.bf16.mxu0 %v976
    %1113 = vmatpush1.bf16.msra.mxu0 %v975
    %1114 = vmatprep.subr.bf16.mxu0 %v978
    %1115 = vmatpush1.bf16.msra.mxu0 %v977
    %1116 = vmatprep.subr.bf16.mxu0 %v980
    %1117 = vmatpush1.bf16.msra.mxu0 %v979
    %1118 = vmatprep.mubr.bf16.mxu0 %v640
    %1119 = vmatmul.mubr.bf16.gmra.mrb[0].mxu0 %v639
    %v1120 = vpop.f32.mrb[0].mxu0
    %v1121 = vadd.f32 %v1080, %v1120
    %v1122 = vpop.f32.mrb[0].mxu0
    %v1123 = vadd.f32 %v1082, %v1122
    %v1124 = vpop.f32.mrb[0].mxu0
    %v1125 = vpop.f32.mrb[0].mxu0
    %1126 = vdwg.mxu0
    %1127 = vmatprep.subr.bf16.mxu0 %v918
    %1128 = vmatpush1.bf16.msra.mxu0 %v917
    %1129 = vmatprep.subr.bf16.mxu0 %v920
    %1130 = vmatpush1.bf16.msra.mxu0 %v919
    %1131 = vmatprep.subr.bf16.mxu0 %v922
    %1132 = vmatpush1.bf16.msra.mxu0 %v921
    %1133 = vmatprep.subr.bf16.mxu0 %v924
    %1134 = vmatpush1.bf16.msra.mxu0 %v923
    %1135 = vmatprep.subr.bf16.mxu0 %v926
    %1136 = vmatpush1.bf16.msra.mxu0 %v925
    %1137 = vmatprep.subr.bf16.mxu0 %v928
    %1138 = vmatpush1.bf16.msra.mxu0 %v927
    %1139 = vmatprep.subr.bf16.mxu0 %v930
    %1140 = vmatpush1.bf16.msra.mxu0 %v929
    %1141 = vmatprep.subr.bf16.mxu0 %v932
    %1142 = vmatpush1.bf16.msra.mxu0 %v931
    %1143 = vmatprep.subr.bf16.mxu0 %v934
    %1144 = vmatpush1.bf16.msra.mxu0 %v933
    %1145 = vmatprep.subr.bf16.mxu0 %v936
    %1146 = vmatpush1.bf16.msra.mxu0 %v935
    %1147 = vmatprep.subr.bf16.mxu0 %v938
    %1148 = vmatpush1.bf16.msra.mxu0 %v937
    %1149 = vmatprep.subr.bf16.mxu0 %v940
    %1150 = vmatpush1.bf16.msra.mxu0 %v939
    %1151 = vmatprep.subr.bf16.mxu0 %v942
    %1152 = vmatpush1.bf16.msra.mxu0 %v941
    %1153 = vmatprep.subr.bf16.mxu0 %v944
    %1154 = vmatpush1.bf16.msra.mxu0 %v943
    %1155 = vmatprep.subr.bf16.mxu0 %v946
    %1156 = vmatpush1.bf16.msra.mxu0 %v945
    %1157 = vmatprep.subr.bf16.mxu0 %v948
    %1158 = vmatpush1.bf16.msra.mxu0 %v947
    %1159 = vmatprep.mubr.bf16.mxu0 %v646
    %1160 = vmatmul.mubr.bf16.gmra.mrb[0].mxu0 %v645
    %v1161 = vpop.f32.mrb[0].mxu0
    %v1162 = vadd.f32 %v718, %v1161
    %v1163 = vpop.f32.mrb[0].mxu0
    %v1164 = vadd.f32 %v722, %v1163
    %v1165 = vpop.f32.mrb[0].mxu0
    %v1166 = vpop.f32.mrb[0].mxu0
    %1167 = vdwg.mxu0
    %1168 = vmatprep.subr.bf16.mxu0 %v950
    %1169 = vmatpush1.bf16.msra.mxu0 %v949
    %1170 = vmatprep.subr.bf16.mxu0 %v952
    %1171 = vmatpush1.bf16.msra.mxu0 %v951
    %1172 = vmatprep.subr.bf16.mxu0 %v954
    %1173 = vmatpush1.bf16.msra.mxu0 %v953
    %1174 = vmatprep.subr.bf16.mxu0 %v956
    %1175 = vmatpush1.bf16.msra.mxu0 %v955
    %1176 = vmatprep.subr.bf16.mxu0 %v958
    %1177 = vmatpush1.bf16.msra.mxu0 %v957
    %1178 = vmatprep.subr.bf16.mxu0 %v960
    %1179 = vmatpush1.bf16.msra.mxu0 %v959
    %1180 = vmatprep.subr.bf16.mxu0 %v962
    %1181 = vmatpush1.bf16.msra.mxu0 %v961
    %1182 = vmatprep.subr.bf16.mxu0 %v964
    %1183 = vmatpush1.bf16.msra.mxu0 %v963
    %1184 = vmatprep.subr.bf16.mxu0 %v966
    %1185 = vmatpush1.bf16.msra.mxu0 %v965
    %1186 = vmatprep.subr.bf16.mxu0 %v968
    %1187 = vmatpush1.bf16.msra.mxu0 %v967
    %1188 = vmatprep.subr.bf16.mxu0 %v970
    %1189 = vmatpush1.bf16.msra.mxu0 %v969
    %1190 = vmatprep.subr.bf16.mxu0 %v972
    %1191 = vmatpush1.bf16.msra.mxu0 %v971
    %1192 = vmatprep.subr.bf16.mxu0 %v974
    %1193 = vmatpush1.bf16.msra.mxu0 %v973
    %1194 = vmatprep.subr.bf16.mxu0 %v976
    %1195 = vmatpush1.bf16.msra.mxu0 %v975
    %1196 = vmatprep.subr.bf16.mxu0 %v978
    %1197 = vmatpush1.bf16.msra.mxu0 %v977
    %1198 = vmatprep.subr.bf16.mxu0 %v980
    %1199 = vmatpush1.bf16.msra.mxu0 %v979
    %1200 = vmatprep.mubr.bf16.mxu0 %v648
    %1201 = vmatmul.mubr.bf16.gmra.mrb[0].mxu0 %v647
    %v1202 = vpop.f32.mrb[0].mxu0
    %v1203 = vadd.f32 %v1162, %v1202
    %v1204 = vpop.f32.mrb[0].mxu0
    %v1205 = vadd.f32 %v1164, %v1204
    %v1206 = vpop.f32.mrb[0].mxu0
    %v1207 = vpop.f32.mrb[0].mxu0
    %1208 = vdwg.mxu0
    %v1209 = vmax.f32 %v1121, 0.0
    %v1210 = vmax.f32 %v1123, 0.0
    %v1211 = vpack.c.bf16 %v1209, %v1209
    %v1212 = vpack.c.bf16 %v1210, %v1210
    %v1213 = vmax.f32 %v1203, 0.0
    %v1214 = vmax.f32 %v1205, 0.0
    %v1215 = vpack.c.bf16 %v1213, %v1213
    %v1216 = vpack.c.bf16 %v1214, %v1214
    %v1217 = vld [vmem:[%s6] sm:$0xf]
    %v1218 = vld [vmem:[%s6 + $0x4] sm:$0xf]
    %v1219 = vld [vmem:[%s6 + $0x8] sm:$0xf]
    %v1220 = vld [vmem:[%s6 + $0xc] sm:$0xf]
    %v1221 = vld [vmem:[%s6 + $0x10] sm:$0xf]
    %v1222 = vld [vmem:[%s6 + $0x14] sm:$0xf]
    %v1223 = vld [vmem:[%s6 + $0x18] sm:$0xf]
    %v1224 = vld [vmem:[%s6 + $0x1c] sm:$0xf]
    %v1225 = vld [vmem:[%s6 + $0x20] sm:$0xf]
    %v1226 = vld [vmem:[%s6 + $0x24] sm:$0xf]
    %v1227 = vld [vmem:[%s6 + $0x28] sm:$0xf]
    %v1228 = vld [vmem:[%s6 + $0x2c] sm:$0xf]
    %v1229 = vld [vmem:[%s6 + $0x30] sm:$0xf]
    %v1230 = vld [vmem:[%s6 + $0x34] sm:$0xf]
    %v1231 = vld [vmem:[%s6 + $0x38] sm:$0xf]
    %v1232 = vld [vmem:[%s6 + $0x3c] sm:$0xf]
    %v1233 = vld [vmem:[%s6 + $0x40] sm:$0xf]
    %v1234 = vld [vmem:[%s6 + $0x44] sm:$0xf]
    %v1235 = vld [vmem:[%s6 + $0x48] sm:$0xf]
    %v1236 = vld [vmem:[%s6 + $0x4c] sm:$0xf]
    %v1237 = vld [vmem:[%s6 + $0x50] sm:$0xf]
    %v1238 = vld [vmem:[%s6 + $0x54] sm:$0xf]
    %v1239 = vld [vmem:[%s6 + $0x58] sm:$0xf]
    %v1240 = vld [vmem:[%s6 + $0x5c] sm:$0xf]
    %v1241 = vld [vmem:[%s6 + $0x60] sm:$0xf]
    %v1242 = vld [vmem:[%s6 + $0x64] sm:$0xf]
    %v1243 = vld [vmem:[%s6 + $0x68] sm:$0xf]
    %v1244 = vld [vmem:[%s6 + $0x6c] sm:$0xf]
    %v1245 = vld [vmem:[%s6 + $0x70] sm:$0xf]
    %v1246 = vld [vmem:[%s6 + $0x74] sm:$0xf]
    %v1247 = vld [vmem:[%s6 + $0x78] sm:$0xf]
    %v1248 = vld [vmem:[%s6 + $0x7c] sm:$0xf]
    %v1249 = vld [vmem:[%s7] sm:$0xf]
    %v1250 = vld [vmem:[%s7 + $0x4] sm:$0xf]
    %v1251 = vld [vmem:[%s7 + $0x8] sm:$0xf]
    %v1252 = vld [vmem:[%s7 + $0xc] sm:$0xf]
    %v1253 = vld [vmem:[%s7 + $0x10] sm:$0xf]
    %v1254 = vld [vmem:[%s7 + $0x14] sm:$0xf]
    %v1255 = vld [vmem:[%s7 + $0x18] sm:$0xf]
    %v1256 = vld [vmem:[%s7 + $0x1c] sm:$0xf]
    %v1257 = vld [vmem:[%s7 + $0x20] sm:$0xf]
    %v1258 = vld [vmem:[%s7 + $0x24] sm:$0xf]
    %v1259 = vld [vmem:[%s7 + $0x28] sm:$0xf]
    %v1260 = vld [vmem:[%s7 + $0x2c] sm:$0xf]
    %v1261 = vld [vmem:[%s7 + $0x30] sm:$0xf]
    %v1262 = vld [vmem:[%s7 + $0x34] sm:$0xf]
    %v1263 = vld [vmem:[%s7 + $0x38] sm:$0xf]
    %v1264 = vld [vmem:[%s7 + $0x3c] sm:$0xf]
    %v1265 = vld [vmem:[%s7 + $0x40] sm:$0xf]
    %v1266 = vld [vmem:[%s7 + $0x44] sm:$0xf]
    %v1267 = vld [vmem:[%s7 + $0x48] sm:$0xf]
    %v1268 = vld [vmem:[%s7 + $0x4c] sm:$0xf]
    %v1269 = vld [vmem:[%s7 + $0x50] sm:$0xf]
    %v1270 = vld [vmem:[%s7 + $0x54] sm:$0xf]
    %v1271 = vld [vmem:[%s7 + $0x58] sm:$0xf]
    %v1272 = vld [vmem:[%s7 + $0x5c] sm:$0xf]
    %v1273 = vld [vmem:[%s7 + $0x60] sm:$0xf]
    %v1274 = vld [vmem:[%s7 + $0x64] sm:$0xf]
    %v1275 = vld [vmem:[%s7 + $0x68] sm:$0xf]
    %v1276 = vld [vmem:[%s7 + $0x6c] sm:$0xf]
    %v1277 = vld [vmem:[%s7 + $0x70] sm:$0xf]
    %v1278 = vld [vmem:[%s7 + $0x74] sm:$0xf]
    %v1279 = vld [vmem:[%s7 + $0x78] sm:$0xf]
    %v1280 = vld [vmem:[%s7 + $0x7c] sm:$0xf]
    %v1313 = vunpack.c.l.b16 %v1249
    %v1314 = vunpack.c.l.b16 %v1250
    %v1315 = vunpack.c.l.b16 %v1251
    %v1316 = vunpack.c.l.b16 %v1252
    %v1317 = vunpack.c.l.b16 %v1253
    %v1318 = vunpack.c.l.b16 %v1254
    %v1319 = vunpack.c.l.b16 %v1255
    %v1320 = vunpack.c.l.b16 %v1256
    %v1321 = vunpack.c.l.b16 %v1257
    %v1322 = vunpack.c.l.b16 %v1258
    %v1323 = vunpack.c.l.b16 %v1259
    %v1324 = vunpack.c.l.b16 %v1260
    %v1325 = vunpack.c.l.b16 %v1261
    %v1326 = vunpack.c.l.b16 %v1262
    %v1327 = vunpack.c.l.b16 %v1263
    %v1328 = vunpack.c.l.b16 %v1264
    %v1329 = vunpack.c.l.b16 %v1265
    %v1330 = vunpack.c.l.b16 %v1266
    %v1331 = vunpack.c.l.b16 %v1267
    %v1332 = vunpack.c.l.b16 %v1268
    %v1333 = vunpack.c.l.b16 %v1269
    %v1334 = vunpack.c.l.b16 %v1270
    %v1335 = vunpack.c.l.b16 %v1271
    %v1336 = vunpack.c.l.b16 %v1272
    %v1337 = vunpack.c.l.b16 %v1273
    %v1338 = vunpack.c.l.b16 %v1274
    %v1339 = vunpack.c.l.b16 %v1275
    %v1340 = vunpack.c.l.b16 %v1276
    %v1341 = vunpack.c.l.b16 %v1277
    %v1342 = vunpack.c.l.b16 %v1278
    %v1343 = vunpack.c.l.b16 %v1279
    %v1344 = vunpack.c.l.b16 %v1280
    %v1345 = vpack.c.b16 %v1314, %v1313
    %v1346 = vpack.c.b16 %v1316, %v1315
    %v1347 = vpack.c.b16 %v1318, %v1317
    %v1348 = vpack.c.b16 %v1320, %v1319
    %v1349 = vpack.c.b16 %v1322, %v1321
    %v1350 = vpack.c.b16 %v1324, %v1323
    %v1351 = vpack.c.b16 %v1326, %v1325
    %v1352 = vpack.c.b16 %v1328, %v1327
    %v1353 = vpack.c.b16 %v1330, %v1329
    %v1354 = vpack.c.b16 %v1332, %v1331
    %v1355 = vpack.c.b16 %v1334, %v1333
    %v1356 = vpack.c.b16 %v1336, %v1335
    %v1357 = vpack.c.b16 %v1338, %v1337
    %v1358 = vpack.c.b16 %v1340, %v1339
    %v1359 = vpack.c.b16 %v1342, %v1341
    %v1360 = vpack.c.b16 %v1344, %v1343
    %1377 = vmatprep.subr.bf16.mxu0 0
    %1378 = vmatpush1.bf16.msra.mxu0 %v1345
    %1379 = vmatprep.subr.bf16.mxu0 0
    %1380 = vmatpush1.bf16.msra.mxu0 %v1346
    %1381 = vmatprep.subr.bf16.mxu0 0
    %1382 = vmatpush1.bf16.msra.mxu0 %v1347
    %1383 = vmatprep.subr.bf16.mxu0 0
    %1384 = vmatpush1.bf16.msra.mxu0 %v1348
    %1385 = vmatprep.subr.bf16.mxu0 0
    %1386 = vmatpush1.bf16.msra.mxu0 %v1349
    %1387 = vmatprep.subr.bf16.mxu0 0
    %1388 = vmatpush1.bf16.msra.mxu0 %v1350
    %1389 = vmatprep.subr.bf16.mxu0 0
    %1390 = vmatpush1.bf16.msra.mxu0 %v1351
    %1391 = vmatprep.subr.bf16.mxu0 0
    %1392 = vmatpush1.bf16.msra.mxu0 %v1352
    %1393 = vmatprep.subr.bf16.mxu0 0
    %1394 = vmatpush1.bf16.msra.mxu0 %v1353
    %1395 = vmatprep.subr.bf16.mxu0 0
    %1396 = vmatpush1.bf16.msra.mxu0 %v1354
    %1397 = vmatprep.subr.bf16.mxu0 0
    %1398 = vmatpush1.bf16.msra.mxu0 %v1355
    %1399 = vmatprep.subr.bf16.mxu0 0
    %1400 = vmatpush1.bf16.msra.mxu0 %v1356
    %1401 = vmatprep.subr.bf16.mxu0 0
    %1402 = vmatpush1.bf16.msra.mxu0 %v1357
    %1403 = vmatprep.subr.bf16.mxu0 0
    %1404 = vmatpush1.bf16.msra.mxu0 %v1358
    %1405 = vmatprep.subr.bf16.mxu0 0
    %1406 = vmatpush1.bf16.msra.mxu0 %v1359
    %1407 = vmatprep.subr.bf16.mxu0 0
    %1408 = vmatpush1.bf16.msra.mxu0 %v1360
    %1409 = vmatprep.mubr.bf16.mxu0 %v1216
    %1410 = vmatmul.mubr.bf16.gmra.mrb[0].mxu0 %v1215
    %v1411 = vpop.f32.mrb[0].mxu0
    %v1412 = vadd.f32 0.0, %v1411
    %v1413 = vpop.f32.mrb[0].mxu0
    %v1414 = vpop.f32.mrb[0].mxu0
    %v1415 = vpop.f32.mrb[0].mxu0
    %1416 = vdwg.mxu0
    %v1449 = vunpack.c.l.b16 %v1217
    %v1450 = vunpack.c.l.b16 %v1218
    %v1451 = vunpack.c.l.b16 %v1219
    %v1452 = vunpack.c.l.b16 %v1220
    %v1453 = vunpack.c.l.b16 %v1221
    %v1454 = vunpack.c.l.b16 %v1222
    %v1455 = vunpack.c.l.b16 %v1223
    %v1456 = vunpack.c.l.b16 %v1224
    %v1457 = vunpack.c.l.b16 %v1225
    %v1458 = vunpack.c.l.b16 %v1226
    %v1459 = vunpack.c.l.b16 %v1227
    %v1460 = vunpack.c.l.b16 %v1228
    %v1461 = vunpack.c.l.b16 %v1229
    %v1462 = vunpack.c.l.b16 %v1230
    %v1463 = vunpack.c.l.b16 %v1231
    %v1464 = vunpack.c.l.b16 %v1232
    %v1465 = vunpack.c.l.b16 %v1233
    %v1466 = vunpack.c.l.b16 %v1234
    %v1467 = vunpack.c.l.b16 %v1235
    %v1468 = vunpack.c.l.b16 %v1236
    %v1469 = vunpack.c.l.b16 %v1237
    %v1470 = vunpack.c.l.b16 %v1238
    %v1471 = vunpack.c.l.b16 %v1239
    %v1472 = vunpack.c.l.b16 %v1240
    %v1473 = vunpack.c.l.b16 %v1241
    %v1474 = vunpack.c.l.b16 %v1242
    %v1475 = vunpack.c.l.b16 %v1243
    %v1476 = vunpack.c.l.b16 %v1244
    %v1477 = vunpack.c.l.b16 %v1245
    %v1478 = vunpack.c.l.b16 %v1246
    %v1479 = vunpack.c.l.b16 %v1247
    %v1480 = vunpack.c.l.b16 %v1248
    %v1481 = vpack.c.b16 %v1450, %v1449
    %v1482 = vpack.c.b16 %v1452, %v1451
    %v1483 = vpack.c.b16 %v1454, %v1453
    %v1484 = vpack.c.b16 %v1456, %v1455
    %v1485 = vpack.c.b16 %v1458, %v1457
    %v1486 = vpack.c.b16 %v1460, %v1459
    %v1487 = vpack.c.b16 %v1462, %v1461
    %v1488 = vpack.c.b16 %v1464, %v1463
    %v1489 = vpack.c.b16 %v1466, %v1465
    %v1490 = vpack.c.b16 %v1468, %v1467
    %v1491 = vpack.c.b16 %v1470, %v1469
    %v1492 = vpack.c.b16 %v1472, %v1471
    %v1493 = vpack.c.b16 %v1474, %v1473
    %v1494 = vpack.c.b16 %v1476, %v1475
    %v1495 = vpack.c.b16 %v1478, %v1477
    %v1496 = vpack.c.b16 %v1480, %v1479
    %1513 = vmatprep.subr.bf16.mxu0 0
    %1514 = vmatpush1.bf16.msra.mxu0 %v1481
    %1515 = vmatprep.subr.bf16.mxu0 0
    %1516 = vmatpush1.bf16.msra.mxu0 %v1482
    %1517 = vmatprep.subr.bf16.mxu0 0
    %1518 = vmatpush1.bf16.msra.mxu0 %v1483
    %1519 = vmatprep.subr.bf16.mxu0 0
    %1520 = vmatpush1.bf16.msra.mxu0 %v1484
    %1521 = vmatprep.subr.bf16.mxu0 0
    %1522 = vmatpush1.bf16.msra.mxu0 %v1485
    %1523 = vmatprep.subr.bf16.mxu0 0
    %1524 = vmatpush1.bf16.msra.mxu0 %v1486
    %1525 = vmatprep.subr.bf16.mxu0 0
    %1526 = vmatpush1.bf16.msra.mxu0 %v1487
    %1527 = vmatprep.subr.bf16.mxu0 0
    %1528 = vmatpush1.bf16.msra.mxu0 %v1488
    %1529 = vmatprep.subr.bf16.mxu0 0
    %1530 = vmatpush1.bf16.msra.mxu0 %v1489
    %1531 = vmatprep.subr.bf16.mxu0 0
    %1532 = vmatpush1.bf16.msra.mxu0 %v1490
    %1533 = vmatprep.subr.bf16.mxu0 0
    %1534 = vmatpush1.bf16.msra.mxu0 %v1491
    %1535 = vmatprep.subr.bf16.mxu0 0
    %1536 = vmatpush1.bf16.msra.mxu0 %v1492
    %1537 = vmatprep.subr.bf16.mxu0 0
    %1538 = vmatpush1.bf16.msra.mxu0 %v1493
    %1539 = vmatprep.subr.bf16.mxu0 0
    %1540 = vmatpush1.bf16.msra.mxu0 %v1494
    %1541 = vmatprep.subr.bf16.mxu0 0
    %1542 = vmatpush1.bf16.msra.mxu0 %v1495
    %1543 = vmatprep.subr.bf16.mxu0 0
    %1544 = vmatpush1.bf16.msra.mxu0 %v1496
    %1545 = vmatprep.mubr.bf16.mxu0 %v1212
    %1546 = vmatmul.mubr.bf16.gmra.mrb[0].mxu0 %v1211
    %v1547 = vpop.f32.mrb[0].mxu0
    %v1548 = vadd.f32 %v1412, %v1547
    %v1549 = vpop.f32.mrb[0].mxu0
    %v1550 = vpop.f32.mrb[0].mxu0
    %v1551 = vpop.f32.mrb[0].mxu0
    %1552 = vdwg.mxu0
    %v1553 = vld [vmem:[%s8] sm:$0x1]
    %v1555 = vlaneseq
    %v1556 = vshrl.u32 %v1555, 7
    %v1557 = vsub.s32 0, %v1556
    %v1558 = vrot.slane %v1553, %v1557
    %v1560 = vadd.f32 %v1548, %v1558
    %v1561 = vsub.f32 0.0, %v1560
    %v1562 = vmul.f32 %v1561, 1.442695
    %v1563 = vpow.pop %v1562
    %v1564 = vadd.f32 %v1563, 1.0
    %v1565 = vrcp.pop %v1564
    %vm1566 = vcmask 130048
    %1567 = vst.msk [vmem:[%s9] sm:$0xff] %vm1566, %v1565
    // Predicated region
    $region46: #{salary_predictor_forward.1} parent=1 // pred_check
      _
    $region47: #{salary_predictor_forward.1} parent=1 // pred_check_branch
      %1569 = sbr.rel (0) target = $region49
    $region48: #{salary_predictor_forward.1} parent=1 // pred_region
      _
    $region49: #{salary_predictor_forward.1} parent=1 // pred_fallthru
      _
    // Predicated region
    $region50: #{salary_predictor_forward.1} parent=1 // pred_check
      _
    $region51: #{salary_predictor_forward.1} parent=1 // pred_check_branch
      %1571 = sbr.rel (0) target = $region53
    $region52: #{salary_predictor_forward.1} parent=1 // pred_region
      _
    $region53: #{salary_predictor_forward.1} parent=1 // pred_fallthru
      _
    %1572 = vsyncpa [#allocation3], 1
    %1573 = vsyncpa [#allocation5], 1

</llo_original>
